<compile_context>
chip_gen: v5e
topology: v5e:2x2
jax: 0.10.0
libtpu: 0.0.40
codegen_flags: <defaults>
</compile_context>

<pallas_src>
import numpy as np
import jax
import jax.numpy as jnp
from jax.experimental import pallas as pl
from jax.experimental.pallas import tpu as pltpu


# -----------------------------------------------------------------------------
# Pallas kernel: forward cINN (conditioned on `condition`) + inverse cINN
# (conditioned on the learned condition_new, pre-folded into cnb1).
# All activations are feature-major: (D or H, B_tile), batch on lanes.
# -----------------------------------------------------------------------------
def _flow_trans_kernel(z_ref, c_ref,
                       sc_ref, ls_ref, isc_ref, lo_ref,
                       wz_ref, wcall_ref, b1all_ref, cnb1_ref,
                       w2_ref, b2_ref,
                       out_ref):
    K = wz_ref.shape[0]          # number of flow blocks
    H = wz_ref.shape[1]          # coupling hidden width
    D = z_ref.shape[0]           # latent dim (sublanes)
    Dh = D // 2

    # halves carried separately; Dh is sublane-aligned (asserted host-side)
    z1 = z_ref[:Dh, :].astype(jnp.float32)       # (Dh, TB)
    z2 = z_ref[Dh:, :].astype(jnp.float32)       # (Dh, TB)

    # One stacked MXU pass for all K condition terms: (K*H, D) @ (D, TB).
    # c_ref is already bf16 (cast host-side); bias b1 is folded in.
    cterms = jnp.dot(wcall_ref[...], c_ref[...],
                     preferred_element_type=jnp.float32) + b1all_ref[...]   # (K*H, TB)

    def coupling_st(za, cond_term, k):
        # conditional 2-layer MLP -> (log-scale s, shift t), both (Dh, TB)
        h = jnp.dot(wz_ref[k], za.astype(jnp.bfloat16),
                    preferred_element_type=jnp.float32)          # (H, TB) f32 acc
        # fuse ReLU + bf16 downcast: only the bf16 copy stays live
        hb = jnp.maximum(h + cond_term, 0.0).astype(jnp.bfloat16)
        o = jnp.dot(w2_ref[k], hb,
                    preferred_element_type=jnp.float32) + b2_ref[k]        # (D, TB)
        return jnp.tanh(o[:Dh, :]), o[Dh:, :]                    # aligned sublane slices

    # ---- forward flow: latent -> zz, conditioned on `condition` ----
    for k in range(K):
        sc = sc_ref[k]                                           # (D, 1) scale
        ls = ls_ref[k]                                           # (D, 1) loc*scale
        z1 = z1 * sc[:Dh] + ls[:Dh]                              # ActNorm (FMA)
        z2 = z2 * sc[Dh:] + ls[Dh:]
        cterm = cterms[k * H:(k + 1) * H, :]                     # static, aligned slice
        if k % 2 == 0:                                           # alternating halves
            s, t = coupling_st(z1, cterm, k)                     # (= folded permutation)
            z2 = z2 * jnp.exp(s) + t
        else:
            s, t = coupling_st(z2, cterm, k)
            z1 = z1 * jnp.exp(s) + t

    # ---- reverse flow: zz -> z', conditioned on condition_new (hoisted) ----
    for k in range(K - 1, -1, -1):
        cterm = cnb1_ref[k]                                      # (H, 1), batch-constant
        if k % 2 == 0:
            s, t = coupling_st(z1, cterm, k)
            z2 = (z2 - t) * jnp.exp(-s)
        else:
            s, t = coupling_st(z2, cterm, k)
            z1 = (z1 - t) * jnp.exp(-s)
        isc = isc_ref[k]                                         # (D, 1) 1/scale
        lo = lo_ref[k]                                           # (D, 1) loc
        z1 = z1 * isc[:Dh] - lo[:Dh]                             # inverse ActNorm (FMA)
        z2 = z2 * isc[Dh:] - lo[Dh:]

    out_ref[:Dh, :] = z1.astype(out_ref.dtype)                   # lane-dense stores
    out_ref[Dh:, :] = z2.astype(out_ref.dtype)


_PARAM_ORDER = ("sc", "ls", "isc", "lo", "wz", "wcall", "b1all", "cnb1",
                "w2t", "b2")


@jax.jit
def cinn_translate(latent, condition, params):
    """latent, condition: (B, D) float32 -> counterfactual latent (B, D) float32."""
    B, D = latent.shape
    LANE = 128

    # Pick the tile first, then pad the batch up to a multiple of it.
    TB = int(min(1024, max(LANE, pl.next_power_of_2(B))))
    Bp = int(pl.cdiv(B, TB)) * TB
    # Guarantee >=2 batch tiles when possible so the "parallel" axis can shard
    # across both TensorCores on v7x (harmless on v5e/v6e).
    if Bp // TB == 1 and Bp >= 2 * LANE:
        TB //= 2

    # feature-major (D, Bp) slabs; batch on lanes. Condition cast to bf16 host-side.
    zt = jnp.pad(latent.astype(jnp.float32).T, ((0, 0), (0, Bp - B)))
    ct = jnp.pad(condition.astype(jnp.float32).T,
                 ((0, 0), (0, Bp - B))).astype(jnp.bfloat16)

    weights = [params[k] for k in _PARAM_ORDER]

    data_spec = pl.BlockSpec((D, TB), lambda i: (0, i))

    def const_spec(a):
        return pl.BlockSpec(a.shape, lambda i, nd=a.ndim: (0,) * nd)

    out_t = pl.pallas_call(
        _flow_trans_kernel,
        out_shape=jax.ShapeDtypeStruct((D, Bp), jnp.float32),
        grid=(Bp // TB,),
        in_specs=[data_spec, data_spec] + [const_spec(a) for a in weights],
        out_specs=data_spec,
        compiler_params=pltpu.CompilerParams(
            dimension_semantics=("parallel",)),              # batch tiles independent
    )(zt, ct, *weights)

    return out_t[:, :B].T


# -----------------------------------------------------------------------------
# JAX-side module mirroring SCVI_OptimTransPy36
# -----------------------------------------------------------------------------
class SCVIOptimTransPallas:
    def __init__(self, n_latent, hidden, n_blocks, key):
        self.n_latent = n_latent
        D, H, K = n_latent, hidden, n_blocks
        Dh = D // 2
        assert D % 16 == 0, "need sublane-aligned half split (Dh % 8 == 0)"

        keys = jax.random.split(key, 8)
        # nn.Parameter: condition_new ~ Normal(0,1), shape (1, n_latent)
        self.condition_new = jax.random.normal(keys[0], (1, D), jnp.float32)

        def bf16_round(x):  # model matmul weights are stored at bf16 precision
            return x.astype(jnp.bfloat16).astype(jnp.float32)

        # Deterministic synthetic flow weights (stacked over K blocks).
        scale = jax.random.uniform(keys[1], (K, D), jnp.float32, 0.8, 1.25)
        loc = 0.1 * jax.random.normal(keys[2], (K, D), jnp.float32)
        wz1 = bf16_round(0.1 * jax.random.normal(keys[3], (K, Dh, H), jnp.float32))
        wc1 = bf16_round(0.1 * jax.random.normal(keys[4], (K, D, H), jnp.float32))
        b1 = 0.1 * jax.random.normal(keys[5], (K, H), jnp.float32)
        w2 = bf16_round(0.1 * jax.random.normal(keys[6], (K, H, D), jnp.float32))
        b2 = 0.1 * jax.random.normal(keys[7], (K, D), jnp.float32)
        self._raw = dict(scale=scale, loc=loc, wz1=wz1, wc1=wc1, b1=b1, w2=w2, b2=b2)

        # Kernel-layout parameters:
        #  * transposed (feature-major) weights, bf16 for MXU
        #  * wc / b1 stacked across blocks -> single (K*H, D) matmul in the kernel
        #  * inv_scale and loc*scale precomputed (no divides in kernel)
        #  * condition_new contribution hoisted: cnb1[k] = wc1[k]^T @ cn + b1[k]
        cn0 = self.condition_new[0]
        cnb1 = jnp.einsum("kdh,d->kh", wc1, cn0) + b1
        self.params = {
            "sc":    scale[..., None],                                    # (K, D, 1)
            "ls":    (loc * scale)[..., None],                            # (K, D, 1)
            "isc":   (1.0 / scale)[..., None],                            # (K, D, 1)
            "lo":    loc[..., None],                                      # (K, D, 1)
            "wz":    jnp.transpose(wz1, (0, 2, 1)).astype(jnp.bfloat16),  # (K, H, Dh)
            "wcall": jnp.transpose(wc1, (0, 2, 1)).reshape(K * H, D)
                        .astype(jnp.bfloat16),                            # (K*H, D)
            "b1all": b1.reshape(K * H, 1),                                # (K*H, 1)
            "cnb1":  cnb1[..., None],                                     # (K, H, 1)
            "w2t":   jnp.transpose(w2, (0, 2, 1)).astype(jnp.bfloat16),   # (K, D, H)
            "b2":    b2[..., None],                                       # (K, D, 1)
        }

    def __call__(self, latent_start, condition):
        # forward(): condition_new is folded into params (cnb1) at init, so no
        # per-call repeat/tile of the learned parameter is materialized.
        return cinn_translate(jnp.asarray(latent_start, jnp.float32),
                              jnp.asarray(condition, jnp.float32),
                              self.params)

    # pure numpy (float64) reference for validation
    def reference(self, latent_start, condition):
        p = {k: np.asarray(v, np.float64) for k, v in self._raw.items()}
        B = latent_start.shape[0]
        D, Dh = self.n_latent, self.n_latent // 2
        K = p["scale"].shape[0]
        z = np.asarray(latent_start, np.float64)
        c = np.asarray(condition, np.float64)
        cn = np.tile(np.asarray(self.condition_new, np.float64), (B, 1))

        def st(za, cond, k):
            h = za @ p["wz1"][k] + cond @ p["wc1"][k] + p["b1"][k]
            h = np.maximum(h, 0.0)
            o = h @ p["w2"][k] + p["b2"][k]
            return np.tanh(o[:, :Dh]), o[:, Dh:]

        for k in range(K):
            z = (z + p["loc"][k]) * p["scale"][k]
            z1, z2 = z[:, :Dh].copy(), z[:, Dh:].copy()
            if k % 2 == 0:
                s, t = st(z1, c, k)
                z2 = z2 * np.exp(s) + t
            else:
                s, t = st(z2, c, k)
                z1 = z1 * np.exp(s) + t
            z = np.concatenate([z1, z2], axis=-1)

        for k in range(K - 1, -1, -1):
            z1, z2 = z[:, :Dh].copy(), z[:, Dh:].copy()
            if k % 2 == 0:
                s, t = st(z1, cn, k)
                z2 = (z2 - t) * np.exp(-s)
            else:
                s, t = st(z2, cn, k)
                z1 = (z1 - t) * np.exp(-s)
            z = np.concatenate([z1, z2], axis=-1)
            z = z / p["scale"][k] - p["loc"][k]
        return z


if __name__ == "__main__":
    B, D, H, K = 2, 32, 64, 4          # batch, n_latent, coupling hidden, flow blocks

    key = jax.random.PRNGKey(0)
    k_mod, k_lat, k_cond = jax.random.split(key, 3)

    module = SCVIOptimTransPallas(n_latent=D, hidden=H, n_blocks=K, key=k_mod)

    latent_start = jax.random.normal(k_lat, (B, D), jnp.float32)
    condition = jax.random.normal(k_cond, (B, D), jnp.float32)

    out = module(latent_start, condition)
    out = jax.block_until_ready(out)

    assert out.shape == (B, D)
    assert bool(jnp.all(jnp.isfinite(out)))
    ref = module.reference(np.asarray(latent_start), np.asarray(condition))
    np.testing.assert_allclose(np.asarray(out), ref, rtol=5e-2, atol=5e-2)

    print("KERNEL_OK")
</pallas_src>

<mosaic_0001>
module attributes {stable_mosaic.version = 11 : i64} {
  func.func @_flow_trans_kernel(%arg0: i32, %arg1: memref<32x128xf32, #tpu.memory_space<vmem>>, %arg2: memref<32x128xbf16, #tpu.memory_space<vmem>>, %arg3: memref<4x32x1xf32, #tpu.memory_space<vmem>>, %arg4: memref<4x32x1xf32, #tpu.memory_space<vmem>>, %arg5: memref<4x32x1xf32, #tpu.memory_space<vmem>>, %arg6: memref<4x32x1xf32, #tpu.memory_space<vmem>>, %arg7: memref<4x64x16xbf16, #tpu.memory_space<vmem>>, %arg8: memref<256x32xbf16, #tpu.memory_space<vmem>>, %arg9: memref<256x1xf32, #tpu.memory_space<vmem>>, %arg10: memref<4x64x1xf32, #tpu.memory_space<vmem>>, %arg11: memref<4x32x64xbf16, #tpu.memory_space<vmem>>, %arg12: memref<4x32x1xf32, #tpu.memory_space<vmem>>, %arg13: memref<32x128xf32, #tpu.memory_space<vmem>>) attributes {dimension_semantics = [#tpu.dimension_semantics<parallel>], iteration_bounds = array<i64: 1>, scalar_prefetch = 0 : i64, scratch_operands = 0 : i64, tpu.core_type = #tpu.core_type<tc>, window_params = [{transform_indices = @transform_0, window_bounds = array<i64: 32, 128>}, {transform_indices = @transform_1, window_bounds = array<i64: 32, 128>}, {pipeline_mode = #tpu.pipeline_mode<synchronous>, transform_indices = @transform_2, window_bounds = array<i64: 4, 32, 1>}, {pipeline_mode = #tpu.pipeline_mode<synchronous>, transform_indices = @transform_3, window_bounds = array<i64: 4, 32, 1>}, {pipeline_mode = #tpu.pipeline_mode<synchronous>, transform_indices = @transform_4, window_bounds = array<i64: 4, 32, 1>}, {pipeline_mode = #tpu.pipeline_mode<synchronous>, transform_indices = @transform_5, window_bounds = array<i64: 4, 32, 1>}, {pipeline_mode = #tpu.pipeline_mode<synchronous>, transform_indices = @transform_6, window_bounds = array<i64: 4, 64, 16>}, {pipeline_mode = #tpu.pipeline_mode<synchronous>, transform_indices = @transform_7, window_bounds = array<i64: 256, 32>}, {pipeline_mode = #tpu.pipeline_mode<synchronous>, transform_indices = @transform_8, window_bounds = array<i64: 256, 1>}, {pipeline_mode = #tpu.pipeline_mode<synchronous>, transform_indices = @transform_9, window_bounds = array<i64: 4, 64, 1>}, {pipeline_mode = #tpu.pipeline_mode<synchronous>, transform_indices = @transform_10, window_bounds = array<i64: 4, 32, 64>}, {pipeline_mode = #tpu.pipeline_mode<synchronous>, transform_indices = @transform_11, window_bounds = array<i64: 4, 32, 1>}, {transform_indices = @transform_12, window_bounds = array<i64: 32, 128>}]} {
    %c0 = arith.constant 0 : index
    %c0_0 = arith.constant 0 : index
    %0 = vector.load %arg1[%c0, %c0_0] : memref<32x128xf32, #tpu.memory_space<vmem>>, vector<16x128xf32>
    %c16 = arith.constant 16 : index
    %c0_1 = arith.constant 0 : index
    %1 = vector.load %arg1[%c16, %c0_1] : memref<32x128xf32, #tpu.memory_space<vmem>>, vector<16x128xf32>
    %c0_2 = arith.constant 0 : index
    %c0_3 = arith.constant 0 : index
    %2 = vector.load %arg8[%c0_2, %c0_3] : memref<256x32xbf16, #tpu.memory_space<vmem>>, vector<256x32xbf16>
    %c0_4 = arith.constant 0 : index
    %c0_5 = arith.constant 0 : index
    %3 = vector.load %arg2[%c0_4, %c0_5] : memref<32x128xbf16, #tpu.memory_space<vmem>>, vector<32x128xbf16>
    %cst = arith.constant dense<0.000000e+00> : vector<256x128xf32>
    %4 = tpu.matmul %2, %3, %cst {dimension_numbers = #tpu.dot_dimension_numbers<[1], [0], [0], [1], [0, 0, 1, 1], [], []>} : vector<256x32xbf16>, vector<32x128xbf16>, vector<256x128xf32> -> vector<256x128xf32>
    %c0_6 = arith.constant 0 : index
    %c0_7 = arith.constant 0 : index
    %5 = vector.load %arg9[%c0_6, %c0_7] : memref<256x1xf32, #tpu.memory_space<vmem>>, vector<256x1xf32>
    %6 = vector.broadcast %5 : vector<256x1xf32> to vector<256x128xf32>
    %7 = arith.addf %4, %6 : vector<256x128xf32>
    %c0_8 = arith.constant 0 : index
    %c0_9 = arith.constant 0 : index
    %c0_10 = arith.constant 0 : index
    %8 = vector.load %arg3[%c0_8, %c0_9, %c0_10] : memref<4x32x1xf32, #tpu.memory_space<vmem>>, vector<1x32x1xf32>
    %9 = vector.shape_cast %8 : vector<1x32x1xf32> to vector<32x1xf32>
    %c0_11 = arith.constant 0 : index
    %c0_12 = arith.constant 0 : index
    %c0_13 = arith.constant 0 : index
    %10 = vector.load %arg4[%c0_11, %c0_12, %c0_13] : memref<4x32x1xf32, #tpu.memory_space<vmem>>, vector<1x32x1xf32>
    %11 = vector.shape_cast %10 : vector<1x32x1xf32> to vector<32x1xf32>
    %12 = vector.extract_strided_slice %9 {offsets = [0, 0], sizes = [16, 1], strides = [1, 1]} : vector<32x1xf32> to vector<16x1xf32>
    %13 = vector.broadcast %12 : vector<16x1xf32> to vector<16x128xf32>
    %14 = arith.mulf %0, %13 : vector<16x128xf32>
    %15 = vector.extract_strided_slice %11 {offsets = [0, 0], sizes = [16, 1], strides = [1, 1]} : vector<32x1xf32> to vector<16x1xf32>
    %16 = vector.broadcast %15 : vector<16x1xf32> to vector<16x128xf32>
    %17 = arith.addf %14, %16 : vector<16x128xf32>
    %18 = vector.extract_strided_slice %9 {offsets = [16, 0], sizes = [16, 1], strides = [1, 1]} : vector<32x1xf32> to vector<16x1xf32>
    %19 = vector.broadcast %18 : vector<16x1xf32> to vector<16x128xf32>
    %20 = arith.mulf %1, %19 : vector<16x128xf32>
    %21 = vector.extract_strided_slice %11 {offsets = [16, 0], sizes = [16, 1], strides = [1, 1]} : vector<32x1xf32> to vector<16x1xf32>
    %22 = vector.broadcast %21 : vector<16x1xf32> to vector<16x128xf32>
    %23 = arith.addf %20, %22 : vector<16x128xf32>
    %24 = vector.extract_strided_slice %7 {offsets = [0, 0], sizes = [64, 128], strides = [1, 1]} : vector<256x128xf32> to vector<64x128xf32>
    %c0_14 = arith.constant 0 : index
    %c0_15 = arith.constant 0 : index
    %c0_16 = arith.constant 0 : index
    %25 = vector.load %arg7[%c0_14, %c0_15, %c0_16] : memref<4x64x16xbf16, #tpu.memory_space<vmem>>, vector<1x64x16xbf16>
    %26 = vector.shape_cast %25 : vector<1x64x16xbf16> to vector<64x16xbf16>
    %27 = arith.truncf %17 : vector<16x128xf32> to vector<16x128xbf16>
    %cst_17 = arith.constant dense<0.000000e+00> : vector<64x128xf32>
    %28 = tpu.matmul %26, %27, %cst_17 {dimension_numbers = #tpu.dot_dimension_numbers<[1], [0], [0], [1], [0, 0, 1, 1], [], []>} : vector<64x16xbf16>, vector<16x128xbf16>, vector<64x128xf32> -> vector<64x128xf32>
    %29 = arith.addf %28, %24 : vector<64x128xf32>
    %cst_18 = arith.constant 0.000000e+00 : f32
    %30 = vector.broadcast %cst_18 : f32 to vector<64x128xf32>
    %31 = arith.maximumf %29, %30 : vector<64x128xf32>
    %32 = arith.truncf %31 : vector<64x128xf32> to vector<64x128xbf16>
    %c0_19 = arith.constant 0 : index
    %c0_20 = arith.constant 0 : index
    %c0_21 = arith.constant 0 : index
    %33 = vector.load %arg11[%c0_19, %c0_20, %c0_21] : memref<4x32x64xbf16, #tpu.memory_space<vmem>>, vector<1x32x64xbf16>
    %34 = vector.shape_cast %33 : vector<1x32x64xbf16> to vector<32x64xbf16>
    %cst_22 = arith.constant dense<0.000000e+00> : vector<32x128xf32>
    %35 = tpu.matmul %34, %32, %cst_22 {dimension_numbers = #tpu.dot_dimension_numbers<[1], [0], [0], [1], [0, 0, 1, 1], [], []>} : vector<32x64xbf16>, vector<64x128xbf16>, vector<32x128xf32> -> vector<32x128xf32>
    %c0_23 = arith.constant 0 : index
    %c0_24 = arith.constant 0 : index
    %c0_25 = arith.constant 0 : index
    %36 = vector.load %arg12[%c0_23, %c0_24, %c0_25] : memref<4x32x1xf32, #tpu.memory_space<vmem>>, vector<1x32x1xf32>
    %37 = vector.shape_cast %36 : vector<1x32x1xf32> to vector<32x1xf32>
    %38 = vector.broadcast %37 : vector<32x1xf32> to vector<32x128xf32>
    %39 = arith.addf %35, %38 : vector<32x128xf32>
    %40 = vector.extract_strided_slice %39 {offsets = [0, 0], sizes = [16, 128], strides = [1, 1]} : vector<32x128xf32> to vector<16x128xf32>
    %41 = math.tanh %40 : vector<16x128xf32>
    %42 = vector.extract_strided_slice %39 {offsets = [16, 0], sizes = [16, 128], strides = [1, 1]} : vector<32x128xf32> to vector<16x128xf32>
    %43 = math.exp %41 : vector<16x128xf32>
    %44 = arith.mulf %23, %43 : vector<16x128xf32>
    %45 = arith.addf %44, %42 : vector<16x128xf32>
    %c1 = arith.constant 1 : index
    %c0_26 = arith.constant 0 : index
    %c0_27 = arith.constant 0 : index
    %46 = vector.load %arg3[%c1, %c0_26, %c0_27] : memref<4x32x1xf32, #tpu.memory_space<vmem>>, vector<1x32x1xf32>
    %47 = vector.shape_cast %46 : vector<1x32x1xf32> to vector<32x1xf32>
    %c1_28 = arith.constant 1 : index
    %c0_29 = arith.constant 0 : index
    %c0_30 = arith.constant 0 : index
    %48 = vector.load %arg4[%c1_28, %c0_29, %c0_30] : memref<4x32x1xf32, #tpu.memory_space<vmem>>, vector<1x32x1xf32>
    %49 = vector.shape_cast %48 : vector<1x32x1xf32> to vector<32x1xf32>
    %50 = vector.extract_strided_slice %47 {offsets = [0, 0], sizes = [16, 1], strides = [1, 1]} : vector<32x1xf32> to vector<16x1xf32>
    %51 = vector.broadcast %50 : vector<16x1xf32> to vector<16x128xf32>
    %52 = arith.mulf %17, %51 : vector<16x128xf32>
    %53 = vector.extract_strided_slice %49 {offsets = [0, 0], sizes = [16, 1], strides = [1, 1]} : vector<32x1xf32> to vector<16x1xf32>
    %54 = vector.broadcast %53 : vector<16x1xf32> to vector<16x128xf32>
    %55 = arith.addf %52, %54 : vector<16x128xf32>
    %56 = vector.extract_strided_slice %47 {offsets = [16, 0], sizes = [16, 1], strides = [1, 1]} : vector<32x1xf32> to vector<16x1xf32>
    %57 = vector.broadcast %56 : vector<16x1xf32> to vector<16x128xf32>
    %58 = arith.mulf %45, %57 : vector<16x128xf32>
    %59 = vector.extract_strided_slice %49 {offsets = [16, 0], sizes = [16, 1], strides = [1, 1]} : vector<32x1xf32> to vector<16x1xf32>
    %60 = vector.broadcast %59 : vector<16x1xf32> to vector<16x128xf32>
    %61 = arith.addf %58, %60 : vector<16x128xf32>
    %62 = vector.extract_strided_slice %7 {offsets = [64, 0], sizes = [64, 128], strides = [1, 1]} : vector<256x128xf32> to vector<64x128xf32>
    %c1_31 = arith.constant 1 : index
    %c0_32 = arith.constant 0 : index
    %c0_33 = arith.constant 0 : index
    %63 = vector.load %arg7[%c1_31, %c0_32, %c0_33] : memref<4x64x16xbf16, #tpu.memory_space<vmem>>, vector<1x64x16xbf16>
    %64 = vector.shape_cast %63 : vector<1x64x16xbf16> to vector<64x16xbf16>
    %65 = arith.truncf %61 : vector<16x128xf32> to vector<16x128xbf16>
    %cst_34 = arith.constant dense<0.000000e+00> : vector<64x128xf32>
    %66 = tpu.matmul %64, %65, %cst_34 {dimension_numbers = #tpu.dot_dimension_numbers<[1], [0], [0], [1], [0, 0, 1, 1], [], []>} : vector<64x16xbf16>, vector<16x128xbf16>, vector<64x128xf32> -> vector<64x128xf32>
    %67 = arith.addf %66, %62 : vector<64x128xf32>
    %cst_35 = arith.constant 0.000000e+00 : f32
    %68 = vector.broadcast %cst_35 : f32 to vector<64x128xf32>
    %69 = arith.maximumf %67, %68 : vector<64x128xf32>
    %70 = arith.truncf %69 : vector<64x128xf32> to vector<64x128xbf16>
    %c1_36 = arith.constant 1 : index
    %c0_37 = arith.constant 0 : index
    %c0_38 = arith.constant 0 : index
    %71 = vector.load %arg11[%c1_36, %c0_37, %c0_38] : memref<4x32x64xbf16, #tpu.memory_space<vmem>>, vector<1x32x64xbf16>
    %72 = vector.shape_cast %71 : vector<1x32x64xbf16> to vector<32x64xbf16>
    %cst_39 = arith.constant dense<0.000000e+00> : vector<32x128xf32>
    %73 = tpu.matmul %72, %70, %cst_39 {dimension_numbers = #tpu.dot_dimension_numbers<[1], [0], [0], [1], [0, 0, 1, 1], [], []>} : vector<32x64xbf16>, vector<64x128xbf16>, vector<32x128xf32> -> vector<32x128xf32>
    %c1_40 = arith.constant 1 : index
    %c0_41 = arith.constant 0 : index
    %c0_42 = arith.constant 0 : index
    %74 = vector.load %arg12[%c1_40, %c0_41, %c0_42] : memref<4x32x1xf32, #tpu.memory_space<vmem>>, vector<1x32x1xf32>
    %75 = vector.shape_cast %74 : vector<1x32x1xf32> to vector<32x1xf32>
    %76 = vector.broadcast %75 : vector<32x1xf32> to vector<32x128xf32>
    %77 = arith.addf %73, %76 : vector<32x128xf32>
    %78 = vector.extract_strided_slice %77 {offsets = [0, 0], sizes = [16, 128], strides = [1, 1]} : vector<32x128xf32> to vector<16x128xf32>
    %79 = math.tanh %78 : vector<16x128xf32>
    %80 = vector.extract_strided_slice %77 {offsets = [16, 0], sizes = [16, 128], strides = [1, 1]} : vector<32x128xf32> to vector<16x128xf32>
    %81 = math.exp %79 : vector<16x128xf32>
    %82 = arith.mulf %55, %81 : vector<16x128xf32>
    %83 = arith.addf %82, %80 : vector<16x128xf32>
    %c2 = arith.constant 2 : index
    %c0_43 = arith.constant 0 : index
    %c0_44 = arith.constant 0 : index
    %84 = vector.load %arg3[%c2, %c0_43, %c0_44] : memref<4x32x1xf32, #tpu.memory_space<vmem>>, vector<1x32x1xf32>
    %85 = vector.shape_cast %84 : vector<1x32x1xf32> to vector<32x1xf32>
    %c2_45 = arith.constant 2 : index
    %c0_46 = arith.constant 0 : index
    %c0_47 = arith.constant 0 : index
    %86 = vector.load %arg4[%c2_45, %c0_46, %c0_47] : memref<4x32x1xf32, #tpu.memory_space<vmem>>, vector<1x32x1xf32>
    %87 = vector.shape_cast %86 : vector<1x32x1xf32> to vector<32x1xf32>
    %88 = vector.extract_strided_slice %85 {offsets = [0, 0], sizes = [16, 1], strides = [1, 1]} : vector<32x1xf32> to vector<16x1xf32>
    %89 = vector.broadcast %88 : vector<16x1xf32> to vector<16x128xf32>
    %90 = arith.mulf %83, %89 : vector<16x128xf32>
    %91 = vector.extract_strided_slice %87 {offsets = [0, 0], sizes = [16, 1], strides = [1, 1]} : vector<32x1xf32> to vector<16x1xf32>
    %92 = vector.broadcast %91 : vector<16x1xf32> to vector<16x128xf32>
    %93 = arith.addf %90, %92 : vector<16x128xf32>
    %94 = vector.extract_strided_slice %85 {offsets = [16, 0], sizes = [16, 1], strides = [1, 1]} : vector<32x1xf32> to vector<16x1xf32>
    %95 = vector.broadcast %94 : vector<16x1xf32> to vector<16x128xf32>
    %96 = arith.mulf %61, %95 : vector<16x128xf32>
    %97 = vector.extract_strided_slice %87 {offsets = [16, 0], sizes = [16, 1], strides = [1, 1]} : vector<32x1xf32> to vector<16x1xf32>
    %98 = vector.broadcast %97 : vector<16x1xf32> to vector<16x128xf32>
    %99 = arith.addf %96, %98 : vector<16x128xf32>
    %100 = vector.extract_strided_slice %7 {offsets = [128, 0], sizes = [64, 128], strides = [1, 1]} : vector<256x128xf32> to vector<64x128xf32>
    %c2_48 = arith.constant 2 : index
    %c0_49 = arith.constant 0 : index
    %c0_50 = arith.constant 0 : index
    %101 = vector.load %arg7[%c2_48, %c0_49, %c0_50] : memref<4x64x16xbf16, #tpu.memory_space<vmem>>, vector<1x64x16xbf16>
    %102 = vector.shape_cast %101 : vector<1x64x16xbf16> to vector<64x16xbf16>
    %103 = arith.truncf %93 : vector<16x128xf32> to vector<16x128xbf16>
    %cst_51 = arith.constant dense<0.000000e+00> : vector<64x128xf32>
    %104 = tpu.matmul %102, %103, %cst_51 {dimension_numbers = #tpu.dot_dimension_numbers<[1], [0], [0], [1], [0, 0, 1, 1], [], []>} : vector<64x16xbf16>, vector<16x128xbf16>, vector<64x128xf32> -> vector<64x128xf32>
    %105 = arith.addf %104, %100 : vector<64x128xf32>
    %cst_52 = arith.constant 0.000000e+00 : f32
    %106 = vector.broadcast %cst_52 : f32 to vector<64x128xf32>
    %107 = arith.maximumf %105, %106 : vector<64x128xf32>
    %108 = arith.truncf %107 : vector<64x128xf32> to vector<64x128xbf16>
    %c2_53 = arith.constant 2 : index
    %c0_54 = arith.constant 0 : index
    %c0_55 = arith.constant 0 : index
    %109 = vector.load %arg11[%c2_53, %c0_54, %c0_55] : memref<4x32x64xbf16, #tpu.memory_space<vmem>>, vector<1x32x64xbf16>
    %110 = vector.shape_cast %109 : vector<1x32x64xbf16> to vector<32x64xbf16>
    %cst_56 = arith.constant dense<0.000000e+00> : vector<32x128xf32>
    %111 = tpu.matmul %110, %108, %cst_56 {dimension_numbers = #tpu.dot_dimension_numbers<[1], [0], [0], [1], [0, 0, 1, 1], [], []>} : vector<32x64xbf16>, vector<64x128xbf16>, vector<32x128xf32> -> vector<32x128xf32>
    %c2_57 = arith.constant 2 : index
    %c0_58 = arith.constant 0 : index
    %c0_59 = arith.constant 0 : index
    %112 = vector.load %arg12[%c2_57, %c0_58, %c0_59] : memref<4x32x1xf32, #tpu.memory_space<vmem>>, vector<1x32x1xf32>
    %113 = vector.shape_cast %112 : vector<1x32x1xf32> to vector<32x1xf32>
    %114 = vector.broadcast %113 : vector<32x1xf32> to vector<32x128xf32>
    %115 = arith.addf %111, %114 : vector<32x128xf32>
    %116 = vector.extract_strided_slice %115 {offsets = [0, 0], sizes = [16, 128], strides = [1, 1]} : vector<32x128xf32> to vector<16x128xf32>
    %117 = math.tanh %116 : vector<16x128xf32>
    %118 = vector.extract_strided_slice %115 {offsets = [16, 0], sizes = [16, 128], strides = [1, 1]} : vector<32x128xf32> to vector<16x128xf32>
    %119 = math.exp %117 : vector<16x128xf32>
    %120 = arith.mulf %99, %119 : vector<16x128xf32>
    %121 = arith.addf %120, %118 : vector<16x128xf32>
    %c3 = arith.constant 3 : index
    %c0_60 = arith.constant 0 : index
    %c0_61 = arith.constant 0 : index
    %122 = vector.load %arg3[%c3, %c0_60, %c0_61] : memref<4x32x1xf32, #tpu.memory_space<vmem>>, vector<1x32x1xf32>
    %123 = vector.shape_cast %122 : vector<1x32x1xf32> to vector<32x1xf32>
    %c3_62 = arith.constant 3 : index
    %c0_63 = arith.constant 0 : index
    %c0_64 = arith.constant 0 : index
    %124 = vector.load %arg4[%c3_62, %c0_63, %c0_64] : memref<4x32x1xf32, #tpu.memory_space<vmem>>, vector<1x32x1xf32>
    %125 = vector.shape_cast %124 : vector<1x32x1xf32> to vector<32x1xf32>
    %126 = vector.extract_strided_slice %123 {offsets = [0, 0], sizes = [16, 1], strides = [1, 1]} : vector<32x1xf32> to vector<16x1xf32>
    %127 = vector.broadcast %126 : vector<16x1xf32> to vector<16x128xf32>
    %128 = arith.mulf %93, %127 : vector<16x128xf32>
    %129 = vector.extract_strided_slice %125 {offsets = [0, 0], sizes = [16, 1], strides = [1, 1]} : vector<32x1xf32> to vector<16x1xf32>
    %130 = vector.broadcast %129 : vector<16x1xf32> to vector<16x128xf32>
    %131 = arith.addf %128, %130 : vector<16x128xf32>
    %132 = vector.extract_strided_slice %123 {offsets = [16, 0], sizes = [16, 1], strides = [1, 1]} : vector<32x1xf32> to vector<16x1xf32>
    %133 = vector.broadcast %132 : vector<16x1xf32> to vector<16x128xf32>
    %134 = arith.mulf %121, %133 : vector<16x128xf32>
    %135 = vector.extract_strided_slice %125 {offsets = [16, 0], sizes = [16, 1], strides = [1, 1]} : vector<32x1xf32> to vector<16x1xf32>
    %136 = vector.broadcast %135 : vector<16x1xf32> to vector<16x128xf32>
    %137 = arith.addf %134, %136 : vector<16x128xf32>
    %138 = vector.extract_strided_slice %7 {offsets = [192, 0], sizes = [64, 128], strides = [1, 1]} : vector<256x128xf32> to vector<64x128xf32>
    %c3_65 = arith.constant 3 : index
    %c0_66 = arith.constant 0 : index
    %c0_67 = arith.constant 0 : index
    %139 = vector.load %arg7[%c3_65, %c0_66, %c0_67] : memref<4x64x16xbf16, #tpu.memory_space<vmem>>, vector<1x64x16xbf16>
    %140 = vector.shape_cast %139 : vector<1x64x16xbf16> to vector<64x16xbf16>
    %141 = arith.truncf %137 : vector<16x128xf32> to vector<16x128xbf16>
    %cst_68 = arith.constant dense<0.000000e+00> : vector<64x128xf32>
    %142 = tpu.matmul %140, %141, %cst_68 {dimension_numbers = #tpu.dot_dimension_numbers<[1], [0], [0], [1], [0, 0, 1, 1], [], []>} : vector<64x16xbf16>, vector<16x128xbf16>, vector<64x128xf32> -> vector<64x128xf32>
    %143 = arith.addf %142, %138 : vector<64x128xf32>
    %cst_69 = arith.constant 0.000000e+00 : f32
    %144 = vector.broadcast %cst_69 : f32 to vector<64x128xf32>
    %145 = arith.maximumf %143, %144 : vector<64x128xf32>
    %146 = arith.truncf %145 : vector<64x128xf32> to vector<64x128xbf16>
    %c3_70 = arith.constant 3 : index
    %c0_71 = arith.constant 0 : index
    %c0_72 = arith.constant 0 : index
    %147 = vector.load %arg11[%c3_70, %c0_71, %c0_72] : memref<4x32x64xbf16, #tpu.memory_space<vmem>>, vector<1x32x64xbf16>
    %148 = vector.shape_cast %147 : vector<1x32x64xbf16> to vector<32x64xbf16>
    %cst_73 = arith.constant dense<0.000000e+00> : vector<32x128xf32>
    %149 = tpu.matmul %148, %146, %cst_73 {dimension_numbers = #tpu.dot_dimension_numbers<[1], [0], [0], [1], [0, 0, 1, 1], [], []>} : vector<32x64xbf16>, vector<64x128xbf16>, vector<32x128xf32> -> vector<32x128xf32>
    %c3_74 = arith.constant 3 : index
    %c0_75 = arith.constant 0 : index
    %c0_76 = arith.constant 0 : index
    %150 = vector.load %arg12[%c3_74, %c0_75, %c0_76] : memref<4x32x1xf32, #tpu.memory_space<vmem>>, vector<1x32x1xf32>
    %151 = vector.shape_cast %150 : vector<1x32x1xf32> to vector<32x1xf32>
    %152 = vector.broadcast %151 : vector<32x1xf32> to vector<32x128xf32>
    %153 = arith.addf %149, %152 : vector<32x128xf32>
    %154 = vector.extract_strided_slice %153 {offsets = [0, 0], sizes = [16, 128], strides = [1, 1]} : vector<32x128xf32> to vector<16x128xf32>
    %155 = math.tanh %154 : vector<16x128xf32>
    %156 = vector.extract_strided_slice %153 {offsets = [16, 0], sizes = [16, 128], strides = [1, 1]} : vector<32x128xf32> to vector<16x128xf32>
    %157 = math.exp %155 : vector<16x128xf32>
    %158 = arith.mulf %131, %157 : vector<16x128xf32>
    %159 = arith.addf %158, %156 : vector<16x128xf32>
    %c3_77 = arith.constant 3 : index
    %c0_78 = arith.constant 0 : index
    %c0_79 = arith.constant 0 : index
    %160 = vector.load %arg10[%c3_77, %c0_78, %c0_79] : memref<4x64x1xf32, #tpu.memory_space<vmem>>, vector<1x64x1xf32>
    %161 = vector.shape_cast %160 : vector<1x64x1xf32> to vector<64x1xf32>
    %c3_80 = arith.constant 3 : index
    %c0_81 = arith.constant 0 : index
    %c0_82 = arith.constant 0 : index
    %162 = vector.load %arg7[%c3_80, %c0_81, %c0_82] : memref<4x64x16xbf16, #tpu.memory_space<vmem>>, vector<1x64x16xbf16>
    %163 = vector.shape_cast %162 : vector<1x64x16xbf16> to vector<64x16xbf16>
    %164 = arith.truncf %137 : vector<16x128xf32> to vector<16x128xbf16>
    %cst_83 = arith.constant dense<0.000000e+00> : vector<64x128xf32>
    %165 = tpu.matmul %163, %164, %cst_83 {dimension_numbers = #tpu.dot_dimension_numbers<[1], [0], [0], [1], [0, 0, 1, 1], [], []>} : vector<64x16xbf16>, vector<16x128xbf16>, vector<64x128xf32> -> vector<64x128xf32>
    %166 = vector.broadcast %161 : vector<64x1xf32> to vector<64x128xf32>
    %167 = arith.addf %165, %166 : vector<64x128xf32>
    %cst_84 = arith.constant 0.000000e+00 : f32
    %168 = vector.broadcast %cst_84 : f32 to vector<64x128xf32>
    %169 = arith.maximumf %167, %168 : vector<64x128xf32>
    %170 = arith.truncf %169 : vector<64x128xf32> to vector<64x128xbf16>
    %c3_85 = arith.constant 3 : index
    %c0_86 = arith.constant 0 : index
    %c0_87 = arith.constant 0 : index
    %171 = vector.load %arg11[%c3_85, %c0_86, %c0_87] : memref<4x32x64xbf16, #tpu.memory_space<vmem>>, vector<1x32x64xbf16>
    %172 = vector.shape_cast %171 : vector<1x32x64xbf16> to vector<32x64xbf16>
    %cst_88 = arith.constant dense<0.000000e+00> : vector<32x128xf32>
    %173 = tpu.matmul %172, %170, %cst_88 {dimension_numbers = #tpu.dot_dimension_numbers<[1], [0], [0], [1], [0, 0, 1, 1], [], []>} : vector<32x64xbf16>, vector<64x128xbf16>, vector<32x128xf32> -> vector<32x128xf32>
    %c3_89 = arith.constant 3 : index
    %c0_90 = arith.constant 0 : index
    %c0_91 = arith.constant 0 : index
    %174 = vector.load %arg12[%c3_89, %c0_90, %c0_91] : memref<4x32x1xf32, #tpu.memory_space<vmem>>, vector<1x32x1xf32>
    %175 = vector.shape_cast %174 : vector<1x32x1xf32> to vector<32x1xf32>
    %176 = vector.broadcast %175 : vector<32x1xf32> to vector<32x128xf32>
    %177 = arith.addf %173, %176 : vector<32x128xf32>
    %178 = vector.extract_strided_slice %177 {offsets = [0, 0], sizes = [16, 128], strides = [1, 1]} : vector<32x128xf32> to vector<16x128xf32>
    %179 = math.tanh %178 : vector<16x128xf32>
    %180 = vector.extract_strided_slice %177 {offsets = [16, 0], sizes = [16, 128], strides = [1, 1]} : vector<32x128xf32> to vector<16x128xf32>
    %181 = arith.subf %159, %180 : vector<16x128xf32>
    %cst_92 = arith.constant 0.000000e+00 : f32
    %182 = vector.broadcast %cst_92 : f32 to vector<16x128xf32>
    %183 = arith.subf %182, %179 : vector<16x128xf32>
    %184 = math.exp %183 : vector<16x128xf32>
    %185 = arith.mulf %181, %184 : vector<16x128xf32>
    %c3_93 = arith.constant 3 : index
    %c0_94 = arith.constant 0 : index
    %c0_95 = arith.constant 0 : index
    %186 = vector.load %arg5[%c3_93, %c0_94, %c0_95] : memref<4x32x1xf32, #tpu.memory_space<vmem>>, vector<1x32x1xf32>
    %187 = vector.shape_cast %186 : vector<1x32x1xf32> to vector<32x1xf32>
    %c3_96 = arith.constant 3 : index
    %c0_97 = arith.constant 0 : index
    %c0_98 = arith.constant 0 : index
    %188 = vector.load %arg6[%c3_96, %c0_97, %c0_98] : memref<4x32x1xf32, #tpu.memory_space<vmem>>, vector<1x32x1xf32>
    %189 = vector.shape_cast %188 : vector<1x32x1xf32> to vector<32x1xf32>
    %190 = vector.extract_strided_slice %187 {offsets = [0, 0], sizes = [16, 1], strides = [1, 1]} : vector<32x1xf32> to vector<16x1xf32>
    %191 = vector.broadcast %190 : vector<16x1xf32> to vector<16x128xf32>
    %192 = arith.mulf %185, %191 : vector<16x128xf32>
    %193 = vector.extract_strided_slice %189 {offsets = [0, 0], sizes = [16, 1], strides = [1, 1]} : vector<32x1xf32> to vector<16x1xf32>
    %194 = vector.broadcast %193 : vector<16x1xf32> to vector<16x128xf32>
    %195 = arith.subf %192, %194 : vector<16x128xf32>
    %196 = vector.extract_strided_slice %187 {offsets = [16, 0], sizes = [16, 1], strides = [1, 1]} : vector<32x1xf32> to vector<16x1xf32>
    %197 = vector.broadcast %196 : vector<16x1xf32> to vector<16x128xf32>
    %198 = arith.mulf %137, %197 : vector<16x128xf32>
    %199 = vector.extract_strided_slice %189 {offsets = [16, 0], sizes = [16, 1], strides = [1, 1]} : vector<32x1xf32> to vector<16x1xf32>
    %200 = vector.broadcast %199 : vector<16x1xf32> to vector<16x128xf32>
    %201 = arith.subf %198, %200 : vector<16x128xf32>
    %c2_99 = arith.constant 2 : index
    %c0_100 = arith.constant 0 : index
    %c0_101 = arith.constant 0 : index
    %202 = vector.load %arg10[%c2_99, %c0_100, %c0_101] : memref<4x64x1xf32, #tpu.memory_space<vmem>>, vector<1x64x1xf32>
    %203 = vector.shape_cast %202 : vector<1x64x1xf32> to vector<64x1xf32>
    %c2_102 = arith.constant 2 : index
    %c0_103 = arith.constant 0 : index
    %c0_104 = arith.constant 0 : index
    %204 = vector.load %arg7[%c2_102, %c0_103, %c0_104] : memref<4x64x16xbf16, #tpu.memory_space<vmem>>, vector<1x64x16xbf16>
    %205 = vector.shape_cast %204 : vector<1x64x16xbf16> to vector<64x16xbf16>
    %206 = arith.truncf %195 : vector<16x128xf32> to vector<16x128xbf16>
    %cst_105 = arith.constant dense<0.000000e+00> : vector<64x128xf32>
    %207 = tpu.matmul %205, %206, %cst_105 {dimension_numbers = #tpu.dot_dimension_numbers<[1], [0], [0], [1], [0, 0, 1, 1], [], []>} : vector<64x16xbf16>, vector<16x128xbf16>, vector<64x128xf32> -> vector<64x128xf32>
    %208 = vector.broadcast %203 : vector<64x1xf32> to vector<64x128xf32>
    %209 = arith.addf %207, %208 : vector<64x128xf32>
    %cst_106 = arith.constant 0.000000e+00 : f32
    %210 = vector.broadcast %cst_106 : f32 to vector<64x128xf32>
    %211 = arith.maximumf %209, %210 : vector<64x128xf32>
    %212 = arith.truncf %211 : vector<64x128xf32> to vector<64x128xbf16>
    %c2_107 = arith.constant 2 : index
    %c0_108 = arith.constant 0 : index
    %c0_109 = arith.constant 0 : index
    %213 = vector.load %arg11[%c2_107, %c0_108, %c0_109] : memref<4x32x64xbf16, #tpu.memory_space<vmem>>, vector<1x32x64xbf16>
    %214 = vector.shape_cast %213 : vector<1x32x64xbf16> to vector<32x64xbf16>
    %cst_110 = arith.constant dense<0.000000e+00> : vector<32x128xf32>
    %215 = tpu.matmul %214, %212, %cst_110 {dimension_numbers = #tpu.dot_dimension_numbers<[1], [0], [0], [1], [0, 0, 1, 1], [], []>} : vector<32x64xbf16>, vector<64x128xbf16>, vector<32x128xf32> -> vector<32x128xf32>
    %c2_111 = arith.constant 2 : index
    %c0_112 = arith.constant 0 : index
    %c0_113 = arith.constant 0 : index
    %216 = vector.load %arg12[%c2_111, %c0_112, %c0_113] : memref<4x32x1xf32, #tpu.memory_space<vmem>>, vector<1x32x1xf32>
    %217 = vector.shape_cast %216 : vector<1x32x1xf32> to vector<32x1xf32>
    %218 = vector.broadcast %217 : vector<32x1xf32> to vector<32x128xf32>
    %219 = arith.addf %215, %218 : vector<32x128xf32>
    %220 = vector.extract_strided_slice %219 {offsets = [0, 0], sizes = [16, 128], strides = [1, 1]} : vector<32x128xf32> to vector<16x128xf32>
    %221 = math.tanh %220 : vector<16x128xf32>
    %222 = vector.extract_strided_slice %219 {offsets = [16, 0], sizes = [16, 128], strides = [1, 1]} : vector<32x128xf32> to vector<16x128xf32>
    %223 = arith.subf %201, %222 : vector<16x128xf32>
    %cst_114 = arith.constant 0.000000e+00 : f32
    %224 = vector.broadcast %cst_114 : f32 to vector<16x128xf32>
    %225 = arith.subf %224, %221 : vector<16x128xf32>
    %226 = math.exp %225 : vector<16x128xf32>
    %227 = arith.mulf %223, %226 : vector<16x128xf32>
    %c2_115 = arith.constant 2 : index
    %c0_116 = arith.constant 0 : index
    %c0_117 = arith.constant 0 : index
    %228 = vector.load %arg5[%c2_115, %c0_116, %c0_117] : memref<4x32x1xf32, #tpu.memory_space<vmem>>, vector<1x32x1xf32>
    %229 = vector.shape_cast %228 : vector<1x32x1xf32> to vector<32x1xf32>
    %c2_118 = arith.constant 2 : index
    %c0_119 = arith.constant 0 : index
    %c0_120 = arith.constant 0 : index
    %230 = vector.load %arg6[%c2_118, %c0_119, %c0_120] : memref<4x32x1xf32, #tpu.memory_space<vmem>>, vector<1x32x1xf32>
    %231 = vector.shape_cast %230 : vector<1x32x1xf32> to vector<32x1xf32>
    %232 = vector.extract_strided_slice %229 {offsets = [0, 0], sizes = [16, 1], strides = [1, 1]} : vector<32x1xf32> to vector<16x1xf32>
    %233 = vector.broadcast %232 : vector<16x1xf32> to vector<16x128xf32>
    %234 = arith.mulf %195, %233 : vector<16x128xf32>
    %235 = vector.extract_strided_slice %231 {offsets = [0, 0], sizes = [16, 1], strides = [1, 1]} : vector<32x1xf32> to vector<16x1xf32>
    %236 = vector.broadcast %235 : vector<16x1xf32> to vector<16x128xf32>
    %237 = arith.subf %234, %236 : vector<16x128xf32>
    %238 = vector.extract_strided_slice %229 {offsets = [16, 0], sizes = [16, 1], strides = [1, 1]} : vector<32x1xf32> to vector<16x1xf32>
    %239 = vector.broadcast %238 : vector<16x1xf32> to vector<16x128xf32>
    %240 = arith.mulf %227, %239 : vector<16x128xf32>
    %241 = vector.extract_strided_slice %231 {offsets = [16, 0], sizes = [16, 1], strides = [1, 1]} : vector<32x1xf32> to vector<16x1xf32>
    %242 = vector.broadcast %241 : vector<16x1xf32> to vector<16x128xf32>
    %243 = arith.subf %240, %242 : vector<16x128xf32>
    %c1_121 = arith.constant 1 : index
    %c0_122 = arith.constant 0 : index
    %c0_123 = arith.constant 0 : index
    %244 = vector.load %arg10[%c1_121, %c0_122, %c0_123] : memref<4x64x1xf32, #tpu.memory_space<vmem>>, vector<1x64x1xf32>
    %245 = vector.shape_cast %244 : vector<1x64x1xf32> to vector<64x1xf32>
    %c1_124 = arith.constant 1 : index
    %c0_125 = arith.constant 0 : index
    %c0_126 = arith.constant 0 : index
    %246 = vector.load %arg7[%c1_124, %c0_125, %c0_126] : memref<4x64x16xbf16, #tpu.memory_space<vmem>>, vector<1x64x16xbf16>
    %247 = vector.shape_cast %246 : vector<1x64x16xbf16> to vector<64x16xbf16>
    %248 = arith.truncf %243 : vector<16x128xf32> to vector<16x128xbf16>
    %cst_127 = arith.constant dense<0.000000e+00> : vector<64x128xf32>
    %249 = tpu.matmul %247, %248, %cst_127 {dimension_numbers = #tpu.dot_dimension_numbers<[1], [0], [0], [1], [0, 0, 1, 1], [], []>} : vector<64x16xbf16>, vector<16x128xbf16>, vector<64x128xf32> -> vector<64x128xf32>
    %250 = vector.broadcast %245 : vector<64x1xf32> to vector<64x128xf32>
    %251 = arith.addf %249, %250 : vector<64x128xf32>
    %cst_128 = arith.constant 0.000000e+00 : f32
    %252 = vector.broadcast %cst_128 : f32 to vector<64x128xf32>
    %253 = arith.maximumf %251, %252 : vector<64x128xf32>
    %254 = arith.truncf %253 : vector<64x128xf32> to vector<64x128xbf16>
    %c1_129 = arith.constant 1 : index
    %c0_130 = arith.constant 0 : index
    %c0_131 = arith.constant 0 : index
    %255 = vector.load %arg11[%c1_129, %c0_130, %c0_131] : memref<4x32x64xbf16, #tpu.memory_space<vmem>>, vector<1x32x64xbf16>
    %256 = vector.shape_cast %255 : vector<1x32x64xbf16> to vector<32x64xbf16>
    %cst_132 = arith.constant dense<0.000000e+00> : vector<32x128xf32>
    %257 = tpu.matmul %256, %254, %cst_132 {dimension_numbers = #tpu.dot_dimension_numbers<[1], [0], [0], [1], [0, 0, 1, 1], [], []>} : vector<32x64xbf16>, vector<64x128xbf16>, vector<32x128xf32> -> vector<32x128xf32>
    %c1_133 = arith.constant 1 : index
    %c0_134 = arith.constant 0 : index
    %c0_135 = arith.constant 0 : index
    %258 = vector.load %arg12[%c1_133, %c0_134, %c0_135] : memref<4x32x1xf32, #tpu.memory_space<vmem>>, vector<1x32x1xf32>
    %259 = vector.shape_cast %258 : vector<1x32x1xf32> to vector<32x1xf32>
    %260 = vector.broadcast %259 : vector<32x1xf32> to vector<32x128xf32>
    %261 = arith.addf %257, %260 : vector<32x128xf32>
    %262 = vector.extract_strided_slice %261 {offsets = [0, 0], sizes = [16, 128], strides = [1, 1]} : vector<32x128xf32> to vector<16x128xf32>
    %263 = math.tanh %262 : vector<16x128xf32>
    %264 = vector.extract_strided_slice %261 {offsets = [16, 0], sizes = [16, 128], strides = [1, 1]} : vector<32x128xf32> to vector<16x128xf32>
    %265 = arith.subf %237, %264 : vector<16x128xf32>
    %cst_136 = arith.constant 0.000000e+00 : f32
    %266 = vector.broadcast %cst_136 : f32 to vector<16x128xf32>
    %267 = arith.subf %266, %263 : vector<16x128xf32>
    %268 = math.exp %267 : vector<16x128xf32>
    %269 = arith.mulf %265, %268 : vector<16x128xf32>
    %c1_137 = arith.constant 1 : index
    %c0_138 = arith.constant 0 : index
    %c0_139 = arith.constant 0 : index
    %270 = vector.load %arg5[%c1_137, %c0_138, %c0_139] : memref<4x32x1xf32, #tpu.memory_space<vmem>>, vector<1x32x1xf32>
    %271 = vector.shape_cast %270 : vector<1x32x1xf32> to vector<32x1xf32>
    %c1_140 = arith.constant 1 : index
    %c0_141 = arith.constant 0 : index
    %c0_142 = arith.constant 0 : index
    %272 = vector.load %arg6[%c1_140, %c0_141, %c0_142] : memref<4x32x1xf32, #tpu.memory_space<vmem>>, vector<1x32x1xf32>
    %273 = vector.shape_cast %272 : vector<1x32x1xf32> to vector<32x1xf32>
    %274 = vector.extract_strided_slice %271 {offsets = [0, 0], sizes = [16, 1], strides = [1, 1]} : vector<32x1xf32> to vector<16x1xf32>
    %275 = vector.broadcast %274 : vector<16x1xf32> to vector<16x128xf32>
    %276 = arith.mulf %269, %275 : vector<16x128xf32>
    %277 = vector.extract_strided_slice %273 {offsets = [0, 0], sizes = [16, 1], strides = [1, 1]} : vector<32x1xf32> to vector<16x1xf32>
    %278 = vector.broadcast %277 : vector<16x1xf32> to vector<16x128xf32>
    %279 = arith.subf %276, %278 : vector<16x128xf32>
    %280 = vector.extract_strided_slice %271 {offsets = [16, 0], sizes = [16, 1], strides = [1, 1]} : vector<32x1xf32> to vector<16x1xf32>
    %281 = vector.broadcast %280 : vector<16x1xf32> to vector<16x128xf32>
    %282 = arith.mulf %243, %281 : vector<16x128xf32>
    %283 = vector.extract_strided_slice %273 {offsets = [16, 0], sizes = [16, 1], strides = [1, 1]} : vector<32x1xf32> to vector<16x1xf32>
    %284 = vector.broadcast %283 : vector<16x1xf32> to vector<16x128xf32>
    %285 = arith.subf %282, %284 : vector<16x128xf32>
    %c0_143 = arith.constant 0 : index
    %c0_144 = arith.constant 0 : index
    %c0_145 = arith.constant 0 : index
    %286 = vector.load %arg10[%c0_143, %c0_144, %c0_145] : memref<4x64x1xf32, #tpu.memory_space<vmem>>, vector<1x64x1xf32>
    %287 = vector.shape_cast %286 : vector<1x64x1xf32> to vector<64x1xf32>
    %c0_146 = arith.constant 0 : index
    %c0_147 = arith.constant 0 : index
    %c0_148 = arith.constant 0 : index
    %288 = vector.load %arg7[%c0_146, %c0_147, %c0_148] : memref<4x64x16xbf16, #tpu.memory_space<vmem>>, vector<1x64x16xbf16>
    %289 = vector.shape_cast %288 : vector<1x64x16xbf16> to vector<64x16xbf16>
    %290 = arith.truncf %279 : vector<16x128xf32> to vector<16x128xbf16>
    %cst_149 = arith.constant dense<0.000000e+00> : vector<64x128xf32>
    %291 = tpu.matmul %289, %290, %cst_149 {dimension_numbers = #tpu.dot_dimension_numbers<[1], [0], [0], [1], [0, 0, 1, 1], [], []>} : vector<64x16xbf16>, vector<16x128xbf16>, vector<64x128xf32> -> vector<64x128xf32>
    %292 = vector.broadcast %287 : vector<64x1xf32> to vector<64x128xf32>
    %293 = arith.addf %291, %292 : vector<64x128xf32>
    %cst_150 = arith.constant 0.000000e+00 : f32
    %294 = vector.broadcast %cst_150 : f32 to vector<64x128xf32>
    %295 = arith.maximumf %293, %294 : vector<64x128xf32>
    %296 = arith.truncf %295 : vector<64x128xf32> to vector<64x128xbf16>
    %c0_151 = arith.constant 0 : index
    %c0_152 = arith.constant 0 : index
    %c0_153 = arith.constant 0 : index
    %297 = vector.load %arg11[%c0_151, %c0_152, %c0_153] : memref<4x32x64xbf16, #tpu.memory_space<vmem>>, vector<1x32x64xbf16>
    %298 = vector.shape_cast %297 : vector<1x32x64xbf16> to vector<32x64xbf16>
    %cst_154 = arith.constant dense<0.000000e+00> : vector<32x128xf32>
    %299 = tpu.matmul %298, %296, %cst_154 {dimension_numbers = #tpu.dot_dimension_numbers<[1], [0], [0], [1], [0, 0, 1, 1], [], []>} : vector<32x64xbf16>, vector<64x128xbf16>, vector<32x128xf32> -> vector<32x128xf32>
    %c0_155 = arith.constant 0 : index
    %c0_156 = arith.constant 0 : index
    %c0_157 = arith.constant 0 : index
    %300 = vector.load %arg12[%c0_155, %c0_156, %c0_157] : memref<4x32x1xf32, #tpu.memory_space<vmem>>, vector<1x32x1xf32>
    %301 = vector.shape_cast %300 : vector<1x32x1xf32> to vector<32x1xf32>
    %302 = vector.broadcast %301 : vector<32x1xf32> to vector<32x128xf32>
    %303 = arith.addf %299, %302 : vector<32x128xf32>
    %304 = vector.extract_strided_slice %303 {offsets = [0, 0], sizes = [16, 128], strides = [1, 1]} : vector<32x128xf32> to vector<16x128xf32>
    %305 = math.tanh %304 : vector<16x128xf32>
    %306 = vector.extract_strided_slice %303 {offsets = [16, 0], sizes = [16, 128], strides = [1, 1]} : vector<32x128xf32> to vector<16x128xf32>
    %307 = arith.subf %285, %306 : vector<16x128xf32>
    %cst_158 = arith.constant 0.000000e+00 : f32
    %308 = vector.broadcast %cst_158 : f32 to vector<16x128xf32>
    %309 = arith.subf %308, %305 : vector<16x128xf32>
    %310 = math.exp %309 : vector<16x128xf32>
    %311 = arith.mulf %307, %310 : vector<16x128xf32>
    %c0_159 = arith.constant 0 : index
    %c0_160 = arith.constant 0 : index
    %c0_161 = arith.constant 0 : index
    %312 = vector.load %arg5[%c0_159, %c0_160, %c0_161] : memref<4x32x1xf32, #tpu.memory_space<vmem>>, vector<1x32x1xf32>
    %313 = vector.shape_cast %312 : vector<1x32x1xf32> to vector<32x1xf32>
    %c0_162 = arith.constant 0 : index
    %c0_163 = arith.constant 0 : index
    %c0_164 = arith.constant 0 : index
    %314 = vector.load %arg6[%c0_162, %c0_163, %c0_164] : memref<4x32x1xf32, #tpu.memory_space<vmem>>, vector<1x32x1xf32>
    %315 = vector.shape_cast %314 : vector<1x32x1xf32> to vector<32x1xf32>
    %316 = vector.extract_strided_slice %313 {offsets = [0, 0], sizes = [16, 1], strides = [1, 1]} : vector<32x1xf32> to vector<16x1xf32>
    %317 = vector.broadcast %316 : vector<16x1xf32> to vector<16x128xf32>
    %318 = arith.mulf %279, %317 : vector<16x128xf32>
    %319 = vector.extract_strided_slice %315 {offsets = [0, 0], sizes = [16, 1], strides = [1, 1]} : vector<32x1xf32> to vector<16x1xf32>
    %320 = vector.broadcast %319 : vector<16x1xf32> to vector<16x128xf32>
    %321 = arith.subf %318, %320 : vector<16x128xf32>
    %322 = vector.extract_strided_slice %313 {offsets = [16, 0], sizes = [16, 1], strides = [1, 1]} : vector<32x1xf32> to vector<16x1xf32>
    %323 = vector.broadcast %322 : vector<16x1xf32> to vector<16x128xf32>
    %324 = arith.mulf %311, %323 : vector<16x128xf32>
    %325 = vector.extract_strided_slice %315 {offsets = [16, 0], sizes = [16, 1], strides = [1, 1]} : vector<32x1xf32> to vector<16x1xf32>
    %326 = vector.broadcast %325 : vector<16x1xf32> to vector<16x128xf32>
    %327 = arith.subf %324, %326 : vector<16x128xf32>
    %c0_165 = arith.constant 0 : index
    %c0_166 = arith.constant 0 : index
    %328 = vector.load %arg13[%c0_165, %c0_166] : memref<32x128xf32, #tpu.memory_space<vmem>>, vector<16x128xf32>
    tpu.vector_store %arg13[%c0_165, %c0_166], %321 {strides = array<i32>} : memref<32x128xf32, #tpu.memory_space<vmem>>, vector<16x128xf32>,
    %c16_167 = arith.constant 16 : index
    %c0_168 = arith.constant 0 : index
    %329 = vector.load %arg13[%c16_167, %c0_168] : memref<32x128xf32, #tpu.memory_space<vmem>>, vector<16x128xf32>
    tpu.vector_store %arg13[%c16_167, %c0_168], %327 {strides = array<i32>} : memref<32x128xf32, #tpu.memory_space<vmem>>, vector<16x128xf32>,
    return
  }
  func.func @transform_0(%arg0: i32) -> (i32, i32) {
    %c0_i32 = arith.constant 0 : i32
    %c0_i32_0 = arith.constant 0 : i32
    return %c0_i32, %arg0 : i32, i32
  }
  func.func @transform_1(%arg0: i32) -> (i32, i32) {
    %c0_i32 = arith.constant 0 : i32
    %c0_i32_0 = arith.constant 0 : i32
    return %c0_i32, %arg0 : i32, i32
  }
  func.func @transform_2(%arg0: i32) -> (i32, i32, i32) {
    %c0_i32 = arith.constant 0 : i32
    %c0_i32_0 = arith.constant 0 : i32
    %c0_i32_1 = arith.constant 0 : i32
    %c0_i32_2 = arith.constant 0 : i32
    return %c0_i32, %c0_i32_0, %c0_i32_1 : i32, i32, i32
  }
  func.func @transform_3(%arg0: i32) -> (i32, i32, i32) {
    %c0_i32 = arith.constant 0 : i32
    %c0_i32_0 = arith.constant 0 : i32
    %c0_i32_1 = arith.constant 0 : i32
    %c0_i32_2 = arith.constant 0 : i32
    return %c0_i32, %c0_i32_0, %c0_i32_1 : i32, i32, i32
  }
  func.func @transform_4(%arg0: i32) -> (i32, i32, i32) {
    %c0_i32 = arith.constant 0 : i32
    %c0_i32_0 = arith.constant 0 : i32
    %c0_i32_1 = arith.constant 0 : i32
    %c0_i32_2 = arith.constant 0 : i32
    return %c0_i32, %c0_i32_0, %c0_i32_1 : i32, i32, i32
  }
  func.func @transform_5(%arg0: i32) -> (i32, i32, i32) {
    %c0_i32 = arith.constant 0 : i32
    %c0_i32_0 = arith.constant 0 : i32
    %c0_i32_1 = arith.constant 0 : i32
    %c0_i32_2 = arith.constant 0 : i32
    return %c0_i32, %c0_i32_0, %c0_i32_1 : i32, i32, i32
  }
  func.func @transform_6(%arg0: i32) -> (i32, i32, i32) {
    %c0_i32 = arith.constant 0 : i32
    %c0_i32_0 = arith.constant 0 : i32
    %c0_i32_1 = arith.constant 0 : i32
    %c0_i32_2 = arith.constant 0 : i32
    return %c0_i32, %c0_i32_0, %c0_i32_1 : i32, i32, i32
  }
  func.func @transform_7(%arg0: i32) -> (i32, i32) {
    %c0_i32 = arith.constant 0 : i32
    %c0_i32_0 = arith.constant 0 : i32
    %c0_i32_1 = arith.constant 0 : i32
    return %c0_i32, %c0_i32_0 : i32, i32
  }
  func.func @transform_8(%arg0: i32) -> (i32, i32) {
    %c0_i32 = arith.constant 0 : i32
    %c0_i32_0 = arith.constant 0 : i32
    %c0_i32_1 = arith.constant 0 : i32
    return %c0_i32, %c0_i32_0 : i32, i32
  }
  func.func @transform_9(%arg0: i32) -> (i32, i32, i32) {
    %c0_i32 = arith.constant 0 : i32
    %c0_i32_0 = arith.constant 0 : i32
    %c0_i32_1 = arith.constant 0 : i32
    %c0_i32_2 = arith.constant 0 : i32
    return %c0_i32, %c0_i32_0, %c0_i32_1 : i32, i32, i32
  }
  func.func @transform_10(%arg0: i32) -> (i32, i32, i32) {
    %c0_i32 = arith.constant 0 : i32
    %c0_i32_0 = arith.constant 0 : i32
    %c0_i32_1 = arith.constant 0 : i32
    %c0_i32_2 = arith.constant 0 : i32
    return %c0_i32, %c0_i32_0, %c0_i32_1 : i32, i32, i32
  }
  func.func @transform_11(%arg0: i32) -> (i32, i32, i32) {
    %c0_i32 = arith.constant 0 : i32
    %c0_i32_0 = arith.constant 0 : i32
    %c0_i32_1 = arith.constant 0 : i32
    %c0_i32_2 = arith.constant 0 : i32
    return %c0_i32, %c0_i32_0, %c0_i32_1 : i32, i32, i32
  }
  func.func @transform_12(%arg0: i32) -> (i32, i32) {
    %c0_i32 = arith.constant 0 : i32
    %c0_i32_0 = arith.constant 0 : i32
    return %c0_i32, %arg0 : i32, i32
  }
}

</mosaic_0001>

<llo_original>
// kernel: cinn_translate.1
$region0: #{cinn_translate.1}
  #allocation0 [shape = 'u32[]', space=smem, size = 0x4, offset = 0x4, fixed_abs, tag = 'smem constant byte address 0x4 - core index']
  #allocation1 [shape = 'u32[72,128]{1,0:T(1,128)}', space=vmem, size = 0x9000, scoped, tag = 'internal scratch']
  %s0 = inlined_call_operand.vmem [shape: f32[32,128], index: 0, kind: input, shape index: {}]
  %s1 = inlined_call_operand.vmem [shape: bf16[32,128], index: 1, kind: input, shape index: {}]
  %s2 = inlined_call_operand.vmem [shape: f32[4,32,1], index: 2, kind: input, shape index: {}]
  %s3 = inlined_call_operand.vmem [shape: f32[4,32,1], index: 3, kind: input, shape index: {}]
  %s4 = inlined_call_operand.vmem [shape: f32[4,32,1], index: 4, kind: input, shape index: {}]
  %s5 = inlined_call_operand.vmem [shape: f32[4,32,1], index: 5, kind: input, shape index: {}]
  %s6 = inlined_call_operand.vmem [shape: bf16[4,64,16], index: 6, kind: input, shape index: {}]
  %s7 = inlined_call_operand.vmem [shape: bf16[256,32], index: 7, kind: input, shape index: {}]
  %s8 = inlined_call_operand.vmem [shape: f32[256,1], index: 8, kind: input, shape index: {}]
  %s9 = inlined_call_operand.vmem [shape: f32[4,64,1], index: 9, kind: input, shape index: {}]
  %s10 = inlined_call_operand.vmem [shape: bf16[4,32,64], index: 10, kind: input, shape index: {}]
  %s11 = inlined_call_operand.vmem [shape: f32[4,32,1], index: 11, kind: input, shape index: {}]
  %s12 = inlined_call_operand.vmem [shape: f32[32,128], index: 12, kind: output, shape index: {}]
  %s13 = sld [smem:[#allocation0]]
  $region58: #{cinn_translate.1} parent=0
    _
  %s15 = ssub.s32 1, %s13
  %s16 = scalar_select 0, %s15, %s13
  // Predicated region
  $region2: #{cinn_translate.1} parent=0 // pred_check
    _
  $region3: #{cinn_translate.1} parent=0 // pred_check_branch
    %18 = sbr.rel (0) target = $region5
  $region4: #{cinn_translate.1} parent=0 // pred_region
    _
  $region5: #{cinn_translate.1} parent=0 // pred_fallthru
    _
  // Predicated region
  $region6: #{cinn_translate.1} parent=0 // pred_check
    _
  $region7: #{cinn_translate.1} parent=0 // pred_check_branch
    %20 = sbr.rel (0) target = $region9
  $region8: #{cinn_translate.1} parent=0 // pred_region
    _
  $region9: #{cinn_translate.1} parent=0 // pred_fallthru
    _
  // Predicated region
  $region10: #{cinn_translate.1} parent=0 // pred_check
    _
  $region11: #{cinn_translate.1} parent=0 // pred_check_branch
    %22 = sbr.rel (0) target = $region13
  $region12: #{cinn_translate.1} parent=0 // pred_region
    _
  $region13: #{cinn_translate.1} parent=0 // pred_fallthru
    _
  // Predicated region
  $region14: #{cinn_translate.1} parent=0 // pred_check
    _
  $region15: #{cinn_translate.1} parent=0 // pred_check_branch
    %24 = sbr.rel (0) target = $region17
  $region16: #{cinn_translate.1} parent=0 // pred_region
    _
  $region17: #{cinn_translate.1} parent=0 // pred_fallthru
    _
  // Predicated region
  $region18: #{cinn_translate.1} parent=0 // pred_check
    _
  $region19: #{cinn_translate.1} parent=0 // pred_check_branch
    %26 = sbr.rel (0) target = $region21
  $region20: #{cinn_translate.1} parent=0 // pred_region
    _
  $region21: #{cinn_translate.1} parent=0 // pred_fallthru
    _
  // Predicated region
  $region22: #{cinn_translate.1} parent=0 // pred_check
    _
  $region23: #{cinn_translate.1} parent=0 // pred_check_branch
    %28 = sbr.rel (0) target = $region25
  $region24: #{cinn_translate.1} parent=0 // pred_region
    _
  $region25: #{cinn_translate.1} parent=0 // pred_fallthru
    _
  // Predicated region
  $region26: #{cinn_translate.1} parent=0 // pred_check
    _
  $region27: #{cinn_translate.1} parent=0 // pred_check_branch
    %30 = sbr.rel (0) target = $region29
  $region28: #{cinn_translate.1} parent=0 // pred_region
    _
  $region29: #{cinn_translate.1} parent=0 // pred_fallthru
    _
  // Predicated region
  $region30: #{cinn_translate.1} parent=0 // pred_check
    _
  $region31: #{cinn_translate.1} parent=0 // pred_check_branch
    %32 = sbr.rel (0) target = $region33
  $region32: #{cinn_translate.1} parent=0 // pred_region
    _
  $region33: #{cinn_translate.1} parent=0 // pred_fallthru
    _
  // Predicated region
  $region34: #{cinn_translate.1} parent=0 // pred_check
    _
  $region35: #{cinn_translate.1} parent=0 // pred_check_branch
    %34 = sbr.rel (0) target = $region37
  $region36: #{cinn_translate.1} parent=0 // pred_region
    _
  $region37: #{cinn_translate.1} parent=0 // pred_fallthru
    _
  // Predicated region
  $region38: #{cinn_translate.1} parent=0 // pred_check
    _
  $region39: #{cinn_translate.1} parent=0 // pred_check_branch
    %36 = sbr.rel (0) target = $region41
  $region40: #{cinn_translate.1} parent=0 // pred_region
    _
  $region41: #{cinn_translate.1} parent=0 // pred_fallthru
    _
  // Predicated region
  $region42: #{cinn_translate.1} parent=0 // pred_check
    _
  $region43: #{cinn_translate.1} parent=0 // pred_check_branch
    %38 = sbr.rel (0) target = $region45
  $region44: #{cinn_translate.1} parent=0 // pred_region
    _
  $region45: #{cinn_translate.1} parent=0 // pred_fallthru
    _
  // Predicated region
  $region46: #{cinn_translate.1} parent=0 // pred_check
    _
  $region47: #{cinn_translate.1} parent=0 // pred_check_branch
    %40 = sbr.rel (0) target = $region49
  $region48: #{cinn_translate.1} parent=0 // pred_region
    _
  $region49: #{cinn_translate.1} parent=0 // pred_fallthru
    _
  %v42 = vld [vmem:[%s0] sm:$0xff]
  %v43 = vld [vmem:[%s0 + $0x8] sm:$0xff]
  %v44 = vld [vmem:[%s0 + $0x10] sm:$0xff]
  %v45 = vld [vmem:[%s0 + $0x18] sm:$0xff]
  %v46 = vld [vmem:[%s7] sm:$0xf]
  %v47 = vld [vmem:[%s7 + $0x4] sm:$0xf]
  %v48 = vld [vmem:[%s7 + $0x8] sm:$0xf]
  %v49 = vld [vmem:[%s7 + $0xc] sm:$0xf]
  %v50 = vld [vmem:[%s7 + $0x10] sm:$0xf]
  %v51 = vld [vmem:[%s7 + $0x14] sm:$0xf]
  %v52 = vld [vmem:[%s7 + $0x18] sm:$0xf]
  %v53 = vld [vmem:[%s7 + $0x1c] sm:$0xf]
  %v54 = vld [vmem:[%s7 + $0x20] sm:$0xf]
  %v55 = vld [vmem:[%s7 + $0x24] sm:$0xf]
  %v56 = vld [vmem:[%s7 + $0x28] sm:$0xf]
  %v57 = vld [vmem:[%s7 + $0x2c] sm:$0xf]
  %v58 = vld [vmem:[%s7 + $0x30] sm:$0xf]
  %v59 = vld [vmem:[%s7 + $0x34] sm:$0xf]
  %v60 = vld [vmem:[%s7 + $0x38] sm:$0xf]
  %v61 = vld [vmem:[%s7 + $0x3c] sm:$0xf]
  %v62 = vld [vmem:[%s7 + $0x40] sm:$0xf]
  %v63 = vld [vmem:[%s7 + $0x44] sm:$0xf]
  %v64 = vld [vmem:[%s7 + $0x48] sm:$0xf]
  %v65 = vld [vmem:[%s7 + $0x4c] sm:$0xf]
  %v66 = vld [vmem:[%s7 + $0x50] sm:$0xf]
  %v67 = vld [vmem:[%s7 + $0x54] sm:$0xf]
  %v68 = vld [vmem:[%s7 + $0x58] sm:$0xf]
  %v69 = vld [vmem:[%s7 + $0x5c] sm:$0xf]
  %v70 = vld [vmem:[%s7 + $0x60] sm:$0xf]
  %v71 = vld [vmem:[%s7 + $0x64] sm:$0xf]
  %v72 = vld [vmem:[%s7 + $0x68] sm:$0xf]
  %v73 = vld [vmem:[%s7 + $0x6c] sm:$0xf]
  %v74 = vld [vmem:[%s7 + $0x70] sm:$0xf]
  %v75 = vld [vmem:[%s7 + $0x74] sm:$0xf]
  %v76 = vld [vmem:[%s7 + $0x78] sm:$0xf]
  %v77 = vld [vmem:[%s7 + $0x7c] sm:$0xf]
  %v78 = vld [vmem:[%s1] sm:$0xf]
  %v79 = vld [vmem:[%s1 + $0x4] sm:$0xf]
  %v80 = vld [vmem:[%s1 + $0x8] sm:$0xf]
  %v81 = vld [vmem:[%s1 + $0xc] sm:$0xf]
  %v82 = vld [vmem:[%s8] sm:$0xff]
  %v83 = vld [vmem:[%s8 + $0x8] sm:$0xff]
  %v84 = vld [vmem:[%s8 + $0x10] sm:$0xff]
  %v85 = vld [vmem:[%s8 + $0x18] sm:$0xff]
  %v86 = vld [vmem:[%s8 + $0x20] sm:$0xff]
  %v87 = vld [vmem:[%s8 + $0x28] sm:$0xff]
  %v88 = vld [vmem:[%s8 + $0x30] sm:$0xff]
  %v89 = vld [vmem:[%s8 + $0x38] sm:$0xff]
  %v90 = vld [vmem:[%s8 + $0x40] sm:$0xff]
  %v91 = vld [vmem:[%s8 + $0x48] sm:$0xff]
  %v92 = vld [vmem:[%s8 + $0x50] sm:$0xff]
  %v93 = vld [vmem:[%s8 + $0x58] sm:$0xff]
  %v94 = vld [vmem:[%s8 + $0x60] sm:$0xff]
  %v95 = vld [vmem:[%s8 + $0x68] sm:$0xff]
  %v96 = vld [vmem:[%s8 + $0x70] sm:$0xff]
  %v97 = vld [vmem:[%s8 + $0x78] sm:$0xff]
  %v98 = vld [vmem:[%s8 + $0x80] sm:$0xff]
  %v99 = vld [vmem:[%s8 + $0x88] sm:$0xff]
  %v100 = vld [vmem:[%s8 + $0x90] sm:$0xff]
  %v101 = vld [vmem:[%s8 + $0x98] sm:$0xff]
  %v102 = vld [vmem:[%s8 + $0xa0] sm:$0xff]
  %v103 = vld [vmem:[%s8 + $0xa8] sm:$0xff]
  %v104 = vld [vmem:[%s8 + $0xb0] sm:$0xff]
  %v105 = vld [vmem:[%s8 + $0xb8] sm:$0xff]
  %v106 = vld [vmem:[%s8 + $0xc0] sm:$0xff]
  %v107 = vld [vmem:[%s8 + $0xc8] sm:$0xff]
  %v108 = vld [vmem:[%s8 + $0xd0] sm:$0xff]
  %v109 = vld [vmem:[%s8 + $0xd8] sm:$0xff]
  %v110 = vld [vmem:[%s8 + $0xe0] sm:$0xff]
  %v111 = vld [vmem:[%s8 + $0xe8] sm:$0xff]
  %v112 = vld [vmem:[%s8 + $0xf0] sm:$0xff]
  %v113 = vld [vmem:[%s8 + $0xf8] sm:$0xff]
  %115 = vset.pattern.permute.xlu0 0
  %116 = vperm.xlu0 %115, %v82
  %v117 = vpop.permute.xlu0 %116
  %120 = vset.pattern.permute.xlu0 0
  %121 = vperm.xlu0 %120, %v83
  %v122 = vpop.permute.xlu0 %121
  %125 = vset.pattern.permute.xlu0 0
  %126 = vperm.xlu0 %125, %v84
  %v127 = vpop.permute.xlu0 %126
  %130 = vset.pattern.permute.xlu0 0
  %131 = vperm.xlu0 %130, %v85
  %v132 = vpop.permute.xlu0 %131
  %135 = vset.pattern.permute.xlu0 0
  %136 = vperm.xlu0 %135, %v86
  %v137 = vpop.permute.xlu0 %136
  %140 = vset.pattern.permute.xlu0 0
  %141 = vperm.xlu0 %140, %v87
  %v142 = vpop.permute.xlu0 %141
  %145 = vset.pattern.permute.xlu0 0
  %146 = vperm.xlu0 %145, %v88
  %v147 = vpop.permute.xlu0 %146
  %150 = vset.pattern.permute.xlu0 0
  %151 = vperm.xlu0 %150, %v89
  %v152 = vpop.permute.xlu0 %151
  %155 = vset.pattern.permute.xlu0 0
  %156 = vperm.xlu0 %155, %v90
  %v157 = vpop.permute.xlu0 %156
  %160 = vset.pattern.permute.xlu0 0
  %161 = vperm.xlu0 %160, %v91
  %v162 = vpop.permute.xlu0 %161
  %165 = vset.pattern.permute.xlu0 0
  %166 = vperm.xlu0 %165, %v92
  %v167 = vpop.permute.xlu0 %166
  %170 = vset.pattern.permute.xlu0 0
  %171 = vperm.xlu0 %170, %v93
  %v172 = vpop.permute.xlu0 %171
  %175 = vset.pattern.permute.xlu0 0
  %176 = vperm.xlu0 %175, %v94
  %v177 = vpop.permute.xlu0 %176
  %180 = vset.pattern.permute.xlu0 0
  %181 = vperm.xlu0 %180, %v95
  %v182 = vpop.permute.xlu0 %181
  %185 = vset.pattern.permute.xlu0 0
  %186 = vperm.xlu0 %185, %v96
  %v187 = vpop.permute.xlu0 %186
  %190 = vset.pattern.permute.xlu0 0
  %191 = vperm.xlu0 %190, %v97
  %v192 = vpop.permute.xlu0 %191
  %195 = vset.pattern.permute.xlu0 0
  %196 = vperm.xlu0 %195, %v98
  %v197 = vpop.permute.xlu0 %196
  %200 = vset.pattern.permute.xlu0 0
  %201 = vperm.xlu0 %200, %v99
  %v202 = vpop.permute.xlu0 %201
  %205 = vset.pattern.permute.xlu0 0
  %206 = vperm.xlu0 %205, %v100
  %v207 = vpop.permute.xlu0 %206
  %210 = vset.pattern.permute.xlu0 0
  %211 = vperm.xlu0 %210, %v101
  %v212 = vpop.permute.xlu0 %211
  %215 = vset.pattern.permute.xlu0 0
  %216 = vperm.xlu0 %215, %v102
  %v217 = vpop.permute.xlu0 %216
  %220 = vset.pattern.permute.xlu0 0
  %221 = vperm.xlu0 %220, %v103
  %v222 = vpop.permute.xlu0 %221
  %225 = vset.pattern.permute.xlu0 0
  %226 = vperm.xlu0 %225, %v104
  %v227 = vpop.permute.xlu0 %226
  %230 = vset.pattern.permute.xlu0 0
  %231 = vperm.xlu0 %230, %v105
  %v232 = vpop.permute.xlu0 %231
  %235 = vset.pattern.permute.xlu0 0
  %236 = vperm.xlu0 %235, %v106
  %v237 = vpop.permute.xlu0 %236
  %240 = vset.pattern.permute.xlu0 0
  %241 = vperm.xlu0 %240, %v107
  %v242 = vpop.permute.xlu0 %241
  %245 = vset.pattern.permute.xlu0 0
  %246 = vperm.xlu0 %245, %v108
  %v247 = vpop.permute.xlu0 %246
  %250 = vset.pattern.permute.xlu0 0
  %251 = vperm.xlu0 %250, %v109
  %v252 = vpop.permute.xlu0 %251
  %255 = vset.pattern.permute.xlu0 0
  %256 = vperm.xlu0 %255, %v110
  %v257 = vpop.permute.xlu0 %256
  %260 = vset.pattern.permute.xlu0 0
  %261 = vperm.xlu0 %260, %v111
  %v262 = vpop.permute.xlu0 %261
  %265 = vset.pattern.permute.xlu0 0
  %266 = vperm.xlu0 %265, %v112
  %v267 = vpop.permute.xlu0 %266
  %270 = vset.pattern.permute.xlu0 0
  %271 = vperm.xlu0 %270, %v113
  %v272 = vpop.permute.xlu0 %271
  %v306 = vunpack.c.l.b16 %v46
  %v307 = vunpack.c.l.b16 %v47
  %v308 = vunpack.c.l.b16 %v48
  %v309 = vunpack.c.l.b16 %v49
  %v310 = vunpack.c.l.b16 %v50
  %v311 = vunpack.c.l.b16 %v51
  %v312 = vunpack.c.l.b16 %v52
  %v313 = vunpack.c.l.b16 %v53
  %v314 = vunpack.c.l.b16 %v54
  %v315 = vunpack.c.l.b16 %v55
  %v316 = vunpack.c.l.b16 %v56
  %v317 = vunpack.c.l.b16 %v57
  %v318 = vunpack.c.l.b16 %v58
  %v319 = vunpack.c.l.b16 %v59
  %v320 = vunpack.c.l.b16 %v60
  %v321 = vunpack.c.l.b16 %v61
  %v322 = vunpack.c.l.b16 %v62
  %v323 = vunpack.c.l.b16 %v63
  %v324 = vunpack.c.l.b16 %v64
  %v325 = vunpack.c.l.b16 %v65
  %v326 = vunpack.c.l.b16 %v66
  %v327 = vunpack.c.l.b16 %v67
  %v328 = vunpack.c.l.b16 %v68
  %v329 = vunpack.c.l.b16 %v69
  %v330 = vunpack.c.l.b16 %v70
  %v331 = vunpack.c.l.b16 %v71
  %v332 = vunpack.c.l.b16 %v72
  %v333 = vunpack.c.l.b16 %v73
  %v334 = vunpack.c.l.b16 %v74
  %v335 = vunpack.c.l.b16 %v75
  %v336 = vunpack.c.l.b16 %v76
  %v337 = vunpack.c.l.b16 %v77
  %v338 = vpack.c.b16 %v307, %v306
  %v339 = vpack.c.b16 %v309, %v308
  %v340 = vpack.c.b16 %v311, %v310
  %v341 = vpack.c.b16 %v313, %v312
  %v342 = vpack.c.b16 %v315, %v314
  %v343 = vpack.c.b16 %v317, %v316
  %v344 = vpack.c.b16 %v319, %v318
  %v345 = vpack.c.b16 %v321, %v320
  %v346 = vpack.c.b16 %v323, %v322
  %v347 = vpack.c.b16 %v325, %v324
  %v348 = vpack.c.b16 %v327, %v326
  %v349 = vpack.c.b16 %v329, %v328
  %v350 = vpack.c.b16 %v331, %v330
  %v351 = vpack.c.b16 %v333, %v332
  %v352 = vpack.c.b16 %v335, %v334
  %v353 = vpack.c.b16 %v337, %v336
  %v358 = vunpack.c.l.b16 %v78
  %v359 = vunpack.c.l.b16 %v79
  %v360 = vunpack.c.l.b16 %v80
  %v361 = vunpack.c.l.b16 %v81
  %v362 = vpack.c.b16 %v359, %v358
  %v363 = vpack.c.b16 %v361, %v360
  %vm366 = vcmask 261120
  %v368 = vsel %vm366, %v338, 0
  %v371 = vsel %vm366, %v339, 0
  %v374 = vsel %vm366, %v340, 0
  %v377 = vsel %vm366, %v341, 0
  %v380 = vsel %vm366, %v342, 0
  %v383 = vsel %vm366, %v343, 0
  %v386 = vsel %vm366, %v344, 0
  %v389 = vsel %vm366, %v345, 0
  %v392 = vsel %vm366, %v346, 0
  %v395 = vsel %vm366, %v347, 0
  %v398 = vsel %vm366, %v348, 0
  %v401 = vsel %vm366, %v349, 0
  %v404 = vsel %vm366, %v350, 0
  %v407 = vsel %vm366, %v351, 0
  %v410 = vsel %vm366, %v352, 0
  %v413 = vsel %vm366, %v353, 0
  %415 = vmatpush.bf16.msra.mxu0 0
  %416 = vmatpush.bf16.msra.mxu0 0
  %417 = vmatpush.bf16.msra.mxu0 0
  %418 = vmatpush.bf16.msra.mxu0 0
  %419 = vmatpush.bf16.msra.mxu0 0
  %420 = vmatpush.bf16.msra.mxu0 0
  %421 = vmatpush.bf16.msra.mxu0 %v363
  %422 = vmatpush.bf16.msra.mxu0 %v362
  %423 = vmatmul.bf16.gmra.mxu0 %v368
  %v424 = vpop.f32.mrf.mxu0
  %v425 = vadd.f32 %v117, %v424
  %v426 = vpop.f32.mrf.mxu0
  %v427 = vadd.f32 %v122, %v426
  %428 = vmatmul.bf16.gmra.mxu0 %v371
  %v429 = vpop.f32.mrf.mxu0
  %v430 = vadd.f32 %v127, %v429
  %v431 = vpop.f32.mrf.mxu0
  %v432 = vadd.f32 %v132, %v431
  %433 = vmatmul.bf16.gmra.mxu0 %v374
  %v434 = vpop.f32.mrf.mxu0
  %v435 = vadd.f32 %v137, %v434
  %v436 = vpop.f32.mrf.mxu0
  %v437 = vadd.f32 %v142, %v436
  %438 = vmatmul.bf16.gmra.mxu0 %v377
  %v439 = vpop.f32.mrf.mxu0
  %v440 = vadd.f32 %v147, %v439
  %v441 = vpop.f32.mrf.mxu0
  %v442 = vadd.f32 %v152, %v441
  %443 = vmatmul.bf16.gmra.mxu0 %v380
  %v444 = vpop.f32.mrf.mxu0
  %v445 = vadd.f32 %v157, %v444
  %v446 = vpop.f32.mrf.mxu0
  %v447 = vadd.f32 %v162, %v446
  %448 = vmatmul.bf16.gmra.mxu0 %v383
  %v449 = vpop.f32.mrf.mxu0
  %v450 = vadd.f32 %v167, %v449
  %v451 = vpop.f32.mrf.mxu0
  %v452 = vadd.f32 %v172, %v451
  %453 = vmatmul.bf16.gmra.mxu0 %v386
  %v454 = vpop.f32.mrf.mxu0
  %v455 = vadd.f32 %v177, %v454
  %v456 = vpop.f32.mrf.mxu0
  %v457 = vadd.f32 %v182, %v456
  %458 = vmatmul.bf16.gmra.mxu0 %v389
  %v459 = vpop.f32.mrf.mxu0
  %v460 = vadd.f32 %v187, %v459
  %v461 = vpop.f32.mrf.mxu0
  %v462 = vadd.f32 %v192, %v461
  %463 = vmatmul.bf16.gmra.mxu0 %v392
  %v464 = vpop.f32.mrf.mxu0
  %v465 = vadd.f32 %v197, %v464
  %v466 = vpop.f32.mrf.mxu0
  %v467 = vadd.f32 %v202, %v466
  %468 = vmatmul.bf16.gmra.mxu0 %v395
  %v469 = vpop.f32.mrf.mxu0
  %v470 = vadd.f32 %v207, %v469
  %v471 = vpop.f32.mrf.mxu0
  %v472 = vadd.f32 %v212, %v471
  %473 = vmatmul.bf16.gmra.mxu0 %v398
  %v474 = vpop.f32.mrf.mxu0
  %v475 = vadd.f32 %v217, %v474
  %v476 = vpop.f32.mrf.mxu0
  %v477 = vadd.f32 %v222, %v476
  %478 = vmatmul.bf16.gmra.mxu0 %v401
  %v479 = vpop.f32.mrf.mxu0
  %v480 = vadd.f32 %v227, %v479
  %v481 = vpop.f32.mrf.mxu0
  %v482 = vadd.f32 %v232, %v481
  %483 = vmatmul.bf16.gmra.mxu0 %v404
  %v484 = vpop.f32.mrf.mxu0
  %v485 = vadd.f32 %v237, %v484
  %v486 = vpop.f32.mrf.mxu0
  %v487 = vadd.f32 %v242, %v486
  %488 = vmatmul.bf16.gmra.mxu0 %v407
  %v489 = vpop.f32.mrf.mxu0
  %v490 = vadd.f32 %v247, %v489
  %v491 = vpop.f32.mrf.mxu0
  %v492 = vadd.f32 %v252, %v491
  %493 = vmatmul.bf16.gmra.mxu0 %v410
  %v494 = vpop.f32.mrf.mxu0
  %v495 = vadd.f32 %v257, %v494
  %v496 = vpop.f32.mrf.mxu0
  %v497 = vadd.f32 %v262, %v496
  %498 = vmatmul.bf16.gmra.mxu0 %v413
  %v499 = vpop.f32.mrf.mxu0
  %v500 = vadd.f32 %v267, %v499
  %v501 = vpop.f32.mrf.mxu0
  %v502 = vadd.f32 %v272, %v501
  %503 = vdwg.mxu0
  %v504 = vld [vmem:[%s2] sm:$0xff]
  %v505 = vld [vmem:[%s2 + $0x8] sm:$0xff]
  %v506 = vld [vmem:[%s2 + $0x10] sm:$0xff]
  %v507 = vld [vmem:[%s2 + $0x18] sm:$0xff]
  %v508 = vld [vmem:[%s3] sm:$0xff]
  %v509 = vld [vmem:[%s3 + $0x8] sm:$0xff]
  %v510 = vld [vmem:[%s3 + $0x10] sm:$0xff]
  %v511 = vld [vmem:[%s3 + $0x18] sm:$0xff]
  %513 = vset.pattern.permute.xlu0 0
  %514 = vperm.xlu0 %513, %v504
  %v515 = vpop.permute.xlu0 %514
  %518 = vset.pattern.permute.xlu0 0
  %519 = vperm.xlu0 %518, %v505
  %v520 = vpop.permute.xlu0 %519
  %v522 = vmul.f32 %v42, %v515
  %v523 = vmul.f32 %v43, %v520
  %525 = vset.pattern.permute.xlu0 0
  %526 = vperm.xlu0 %525, %v508
  %v527 = vpop.permute.xlu0 %526
  %530 = vset.pattern.permute.xlu0 0
  %531 = vperm.xlu0 %530, %v509
  %v532 = vpop.permute.xlu0 %531
  %v534 = vadd.f32 %v522, %v527
  %v535 = vadd.f32 %v523, %v532
  %537 = vset.pattern.permute.xlu0 0
  %538 = vperm.xlu0 %537, %v506
  %v539 = vpop.permute.xlu0 %538
  %542 = vset.pattern.permute.xlu0 0
  %543 = vperm.xlu0 %542, %v507
  %v544 = vpop.permute.xlu0 %543
  %v546 = vmul.f32 %v44, %v539
  %v547 = vmul.f32 %v45, %v544
  %549 = vset.pattern.permute.xlu0 0
  %550 = vperm.xlu0 %549, %v510
  %v551 = vpop.permute.xlu0 %550
  %554 = vset.pattern.permute.xlu0 0
  %555 = vperm.xlu0 %554, %v511
  %v556 = vpop.permute.xlu0 %555
  %v558 = vadd.f32 %v546, %v551
  %v559 = vadd.f32 %v547, %v556
  %v560 = vld [vmem:[%s6] sm:$0xf]
  %v561 = vld [vmem:[%s6 + $0x4] sm:$0xf]
  %v562 = vld [vmem:[%s6 + $0x8] sm:$0xf]
  %v563 = vld [vmem:[%s6 + $0xc] sm:$0xf]
  %v564 = vld [vmem:[%s6 + $0x10] sm:$0xf]
  %v565 = vld [vmem:[%s6 + $0x14] sm:$0xf]
  %v566 = vld [vmem:[%s6 + $0x18] sm:$0xf]
  %v567 = vld [vmem:[%s6 + $0x1c] sm:$0xf]
  %v568 = vpack.c.bf16 %v535, %v534
  %v577 = vunpack.c.l.b16 %v560
  %v578 = vunpack.c.l.b16 %v561
  %v579 = vunpack.c.l.b16 %v562
  %v580 = vunpack.c.l.b16 %v563
  %v581 = vunpack.c.l.b16 %v564
  %v582 = vunpack.c.l.b16 %v565
  %v583 = vunpack.c.l.b16 %v566
  %v584 = vunpack.c.l.b16 %v567
  %v585 = vpack.c.b16 %v578, %v577
  %v586 = vpack.c.b16 %v580, %v579
  %v587 = vpack.c.b16 %v582, %v581
  %v588 = vpack.c.b16 %v584, %v583
  %vm589 = vcmask 130048
  %v591 = vsel %vm589, %v585, 0
  %v594 = vsel %vm589, %v586, 0
  %v597 = vsel %vm589, %v587, 0
  %v600 = vsel %vm589, %v588, 0
  %602 = vmatpush.bf16.msra.mxu0 0
  %603 = vmatpush.bf16.msra.mxu0 0
  %604 = vmatpush.bf16.msra.mxu0 0
  %605 = vmatpush.bf16.msra.mxu0 0
  %606 = vmatpush.bf16.msra.mxu0 0
  %607 = vmatpush.bf16.msra.mxu0 0
  %608 = vmatpush.bf16.msra.mxu0 0
  %609 = vmatpush.bf16.msra.mxu0 %v568
  %610 = vmatmul.bf16.gmra.mxu0 %v591
  %v611 = vpop.f32.mrf.mxu0
  %v612 = vadd.f32 %v425, %v611
  %v613 = vpop.f32.mrf.mxu0
  %v614 = vadd.f32 %v427, %v613
  %615 = vmatmul.bf16.gmra.mxu0 %v594
  %v616 = vpop.f32.mrf.mxu0
  %v617 = vadd.f32 %v430, %v616
  %v618 = vpop.f32.mrf.mxu0
  %v619 = vadd.f32 %v432, %v618
  %620 = vmatmul.bf16.gmra.mxu0 %v597
  %v621 = vpop.f32.mrf.mxu0
  %v622 = vadd.f32 %v435, %v621
  %v623 = vpop.f32.mrf.mxu0
  %v624 = vadd.f32 %v437, %v623
  %625 = vmatmul.bf16.gmra.mxu0 %v600
  %v626 = vpop.f32.mrf.mxu0
  %v627 = vadd.f32 %v440, %v626
  %v628 = vpop.f32.mrf.mxu0
  %v629 = vadd.f32 %v442, %v628
  %630 = vdwg.mxu0
  %v631 = vmax.f32 %v612, 0.0
  %v632 = vmax.f32 %v614, 0.0
  %v633 = vmax.f32 %v617, 0.0
  %v634 = vmax.f32 %v619, 0.0
  %v635 = vmax.f32 %v622, 0.0
  %v636 = vmax.f32 %v624, 0.0
  %v637 = vmax.f32 %v627, 0.0
  %v638 = vmax.f32 %v629, 0.0
  %v639 = vpack.c.bf16 %v632, %v631
  %v640 = vpack.c.bf16 %v634, %v633
  %v641 = vpack.c.bf16 %v636, %v635
  %v642 = vpack.c.bf16 %v638, %v637
  %v643 = vld [vmem:[%s10] sm:$0xf]
  %v644 = vld [vmem:[%s10 + $0x4] sm:$0xf]
  %v645 = vld [vmem:[%s10 + $0x8] sm:$0xf]
  %v646 = vld [vmem:[%s10 + $0xc] sm:$0xf]
  %v647 = vld [vmem:[%s11] sm:$0xff]
  %v648 = vld [vmem:[%s11 + $0x8] sm:$0xff]
  %v649 = vld [vmem:[%s11 + $0x10] sm:$0xff]
  %v650 = vld [vmem:[%s11 + $0x18] sm:$0xff]
  %652 = vset.pattern.permute.xlu0 0
  %653 = vperm.xlu0 %652, %v647
  %v654 = vpop.permute.xlu0 %653
  %657 = vset.pattern.permute.xlu0 0
  %658 = vperm.xlu0 %657, %v648
  %v659 = vpop.permute.xlu0 %658
  %662 = vset.pattern.permute.xlu0 0
  %663 = vperm.xlu0 %662, %v649
  %v664 = vpop.permute.xlu0 %663
  %667 = vset.pattern.permute.xlu0 0
  %668 = vperm.xlu0 %667, %v650
  %v669 = vpop.permute.xlu0 %668
  %v675 = vunpack.c.l.b16 %v643
  %v676 = vunpack.c.l.b16 %v644
  %v677 = vunpack.c.l.b16 %v645
  %v678 = vunpack.c.l.b16 %v646
  %v679 = vpack.c.b16 %v676, %v675
  %v680 = vpack.c.b16 %v678, %v677
  %vm681 = vcmask 523264
  %v683 = vsel %vm681, %v679, 0
  %v686 = vsel %vm681, %v680, 0
  %688 = vmatpush.bf16.msra.mxu0 0
  %689 = vmatpush.bf16.msra.mxu0 0
  %690 = vmatpush.bf16.msra.mxu0 0
  %691 = vmatpush.bf16.msra.mxu0 0
  %692 = vmatpush.bf16.msra.mxu0 %v642
  %693 = vmatpush.bf16.msra.mxu0 %v641
  %694 = vmatpush.bf16.msra.mxu0 %v640
  %695 = vmatpush.bf16.msra.mxu0 %v639
  %696 = vmatmul.bf16.gmra.mxu0 %v683
  %v697 = vpop.f32.mrf.mxu0
  %v698 = vadd.f32 %v654, %v697
  %v699 = vpop.f32.mrf.mxu0
  %v700 = vadd.f32 %v659, %v699
  %701 = vmatmul.bf16.gmra.mxu0 %v686
  %v702 = vpop.f32.mrf.mxu0
  %v703 = vadd.f32 %v664, %v702
  %v704 = vpop.f32.mrf.mxu0
  %v705 = vadd.f32 %v669, %v704
  %706 = vdwg.mxu0
  %v707 = vtanh.pop %v698
  %v708 = vtanh.pop %v700
  %v709 = vmul.f32 %v707, 1.442695
  %v710 = vpow.pop %v709
  %v711 = vmul.f32 %v708, 1.442695
  %v712 = vpow.pop %v711
  %v713 = vmul.f32 %v558, %v710
  %v714 = vmul.f32 %v559, %v712
  %v715 = vadd.f32 %v713, %v703
  %v716 = vadd.f32 %v714, %v705
  %s717 = scalar_lea.vmem %s2, 32
  %v718 = vld [vmem:[%s717] sm:$0xff]
  %v719 = vld [vmem:[%s717 + $0x8] sm:$0xff]
  %v720 = vld [vmem:[%s717 + $0x10] sm:$0xff]
  %v721 = vld [vmem:[%s717 + $0x18] sm:$0xff]
  %s722 = scalar_lea.vmem %s3, 32
  %v723 = vld [vmem:[%s722] sm:$0xff]
  %v724 = vld [vmem:[%s722 + $0x8] sm:$0xff]
  %v725 = vld [vmem:[%s722 + $0x10] sm:$0xff]
  %v726 = vld [vmem:[%s722 + $0x18] sm:$0xff]
  %728 = vset.pattern.permute.xlu0 0
  %729 = vperm.xlu0 %728, %v718
  %v730 = vpop.permute.xlu0 %729
  %733 = vset.pattern.permute.xlu0 0
  %734 = vperm.xlu0 %733, %v719
  %v735 = vpop.permute.xlu0 %734
  %v737 = vmul.f32 %v534, %v730
  %v738 = vmul.f32 %v535, %v735
  %740 = vset.pattern.permute.xlu0 0
  %741 = vperm.xlu0 %740, %v723
  %v742 = vpop.permute.xlu0 %741
  %745 = vset.pattern.permute.xlu0 0
  %746 = vperm.xlu0 %745, %v724
  %v747 = vpop.permute.xlu0 %746
  %v749 = vadd.f32 %v737, %v742
  %v750 = vadd.f32 %v738, %v747
  %752 = vset.pattern.permute.xlu0 0
  %753 = vperm.xlu0 %752, %v720
  %v754 = vpop.permute.xlu0 %753
  %757 = vset.pattern.permute.xlu0 0
  %758 = vperm.xlu0 %757, %v721
  %v759 = vpop.permute.xlu0 %758
  %v761 = vmul.f32 %v715, %v754
  %v762 = vmul.f32 %v716, %v759
  %764 = vset.pattern.permute.xlu0 0
  %765 = vperm.xlu0 %764, %v725
  %v766 = vpop.permute.xlu0 %765
  %769 = vset.pattern.permute.xlu0 0
  %770 = vperm.xlu0 %769, %v726
  %v771 = vpop.permute.xlu0 %770
  %v773 = vadd.f32 %v761, %v766
  %v774 = vadd.f32 %v762, %v771
  %s775 = scalar_lea.vmem %s6, 32
  %v776 = vld [vmem:[%s775] sm:$0xf]
  %v777 = vld [vmem:[%s775 + $0x4] sm:$0xf]
  %v778 = vld [vmem:[%s775 + $0x8] sm:$0xf]
  %v779 = vld [vmem:[%s775 + $0xc] sm:$0xf]
  %v780 = vld [vmem:[%s775 + $0x10] sm:$0xf]
  %v781 = vld [vmem:[%s775 + $0x14] sm:$0xf]
  %v782 = vld [vmem:[%s775 + $0x18] sm:$0xf]
  %v783 = vld [vmem:[%s775 + $0x1c] sm:$0xf]
  %v784 = vpack.c.bf16 %v774, %v773
  %v793 = vunpack.c.l.b16 %v776
  %v794 = vunpack.c.l.b16 %v777
  %v795 = vunpack.c.l.b16 %v778
  %v796 = vunpack.c.l.b16 %v779
  %v797 = vunpack.c.l.b16 %v780
  %v798 = vunpack.c.l.b16 %v781
  %v799 = vunpack.c.l.b16 %v782
  %v800 = vunpack.c.l.b16 %v783
  %v801 = vpack.c.b16 %v794, %v793
  %v802 = vpack.c.b16 %v796, %v795
  %v803 = vpack.c.b16 %v798, %v797
  %v804 = vpack.c.b16 %v800, %v799
  %v806 = vsel %vm589, %v801, 0
  %v809 = vsel %vm589, %v802, 0
  %v812 = vsel %vm589, %v803, 0
  %v815 = vsel %vm589, %v804, 0
  %817 = vmatpush.bf16.msra.mxu0 0
  %818 = vmatpush.bf16.msra.mxu0 0
  %819 = vmatpush.bf16.msra.mxu0 0
  %820 = vmatpush.bf16.msra.mxu0 0
  %821 = vmatpush.bf16.msra.mxu0 0
  %822 = vmatpush.bf16.msra.mxu0 0
  %823 = vmatpush.bf16.msra.mxu0 0
  %824 = vmatpush.bf16.msra.mxu0 %v784
  %825 = vmatmul.bf16.gmra.mxu0 %v806
  %v826 = vpop.f32.mrf.mxu0
  %v827 = vadd.f32 %v445, %v826
  %v828 = vpop.f32.mrf.mxu0
  %v829 = vadd.f32 %v447, %v828
  %830 = vmatmul.bf16.gmra.mxu0 %v809
  %v831 = vpop.f32.mrf.mxu0
  %v832 = vadd.f32 %v450, %v831
  %v833 = vpop.f32.mrf.mxu0
  %v834 = vadd.f32 %v452, %v833
  %835 = vmatmul.bf16.gmra.mxu0 %v812
  %v836 = vpop.f32.mrf.mxu0
  %v837 = vadd.f32 %v455, %v836
  %v838 = vpop.f32.mrf.mxu0
  %v839 = vadd.f32 %v457, %v838
  %840 = vmatmul.bf16.gmra.mxu0 %v815
  %v841 = vpop.f32.mrf.mxu0
  %v842 = vadd.f32 %v460, %v841
  %v843 = vpop.f32.mrf.mxu0
  %v844 = vadd.f32 %v462, %v843
  %845 = vdwg.mxu0
  %v846 = vmax.f32 %v827, 0.0
  %v847 = vmax.f32 %v829, 0.0
  %v848 = vmax.f32 %v832, 0.0
  %v849 = vmax.f32 %v834, 0.0
  %v850 = vmax.f32 %v837, 0.0
  %v851 = vmax.f32 %v839, 0.0
  %v852 = vmax.f32 %v842, 0.0
  %v853 = vmax.f32 %v844, 0.0
  %v854 = vpack.c.bf16 %v847, %v846
  %v855 = vpack.c.bf16 %v849, %v848
  %v856 = vpack.c.bf16 %v851, %v850
  %v857 = vpack.c.bf16 %v853, %v852
  %s858 = scalar_lea.vmem %s10, 16
  %v859 = vld [vmem:[%s858] sm:$0xf]
  %v860 = vld [vmem:[%s858 + $0x4] sm:$0xf]
  %v861 = vld [vmem:[%s858 + $0x8] sm:$0xf]
  %v862 = vld [vmem:[%s858 + $0xc] sm:$0xf]
  %s863 = scalar_lea.vmem %s11, 32
  %v864 = vld [vmem:[%s863] sm:$0xff]
  %v865 = vld [vmem:[%s863 + $0x8] sm:$0xff]
  %v866 = vld [vmem:[%s863 + $0x10] sm:$0xff]
  %v867 = vld [vmem:[%s863 + $0x18] sm:$0xff]
  %869 = vset.pattern.permute.xlu0 0
  %870 = vperm.xlu0 %869, %v864
  %v871 = vpop.permute.xlu0 %870
  %874 = vset.pattern.permute.xlu0 0
  %875 = vperm.xlu0 %874, %v865
  %v876 = vpop.permute.xlu0 %875
  %879 = vset.pattern.permute.xlu0 0
  %880 = vperm.xlu0 %879, %v866
  %v881 = vpop.permute.xlu0 %880
  %884 = vset.pattern.permute.xlu0 0
  %885 = vperm.xlu0 %884, %v867
  %v886 = vpop.permute.xlu0 %885
  %v892 = vunpack.c.l.b16 %v859
  %v893 = vunpack.c.l.b16 %v860
  %v894 = vunpack.c.l.b16 %v861
  %v895 = vunpack.c.l.b16 %v862
  %v896 = vpack.c.b16 %v893, %v892
  %v897 = vpack.c.b16 %v895, %v894
  %v899 = vsel %vm681, %v896, 0
  %v902 = vsel %vm681, %v897, 0
  %904 = vmatpush.bf16.msra.mxu0 0
  %905 = vmatpush.bf16.msra.mxu0 0
  %906 = vmatpush.bf16.msra.mxu0 0
  %907 = vmatpush.bf16.msra.mxu0 0
  %908 = vmatpush.bf16.msra.mxu0 %v857
  %909 = vmatpush.bf16.msra.mxu0 %v856
  %910 = vmatpush.bf16.msra.mxu0 %v855
  %911 = vmatpush.bf16.msra.mxu0 %v854
  %912 = vmatmul.bf16.gmra.mxu0 %v899
  %v913 = vpop.f32.mrf.mxu0
  %v914 = vadd.f32 %v871, %v913
  %v915 = vpop.f32.mrf.mxu0
  %v916 = vadd.f32 %v876, %v915
  %917 = vmatmul.bf16.gmra.mxu0 %v902
  %v918 = vpop.f32.mrf.mxu0
  %v919 = vadd.f32 %v881, %v918
  %v920 = vpop.f32.mrf.mxu0
  %v921 = vadd.f32 %v886, %v920
  %922 = vdwg.mxu0
  %v923 = vtanh.pop %v914
  %v924 = vtanh.pop %v916
  %v925 = vmul.f32 %v923, 1.442695
  %v926 = vpow.pop %v925
  %v927 = vmul.f32 %v924, 1.442695
  %v928 = vpow.pop %v927
  %v929 = vmul.f32 %v749, %v926
  %v930 = vmul.f32 %v750, %v928
  %v931 = vadd.f32 %v929, %v919
  %v932 = vadd.f32 %v930, %v921
  %s933 = scalar_lea.vmem %s2, 64
  %v934 = vld [vmem:[%s933] sm:$0xff]
  %v935 = vld [vmem:[%s933 + $0x8] sm:$0xff]
  %v936 = vld [vmem:[%s933 + $0x10] sm:$0xff]
  %v937 = vld [vmem:[%s933 + $0x18] sm:$0xff]
  %s938 = scalar_lea.vmem %s3, 64
  %v939 = vld [vmem:[%s938] sm:$0xff]
  %v940 = vld [vmem:[%s938 + $0x8] sm:$0xff]
  %v941 = vld [vmem:[%s938 + $0x10] sm:$0xff]
  %v942 = vld [vmem:[%s938 + $0x18] sm:$0xff]
  %944 = vset.pattern.permute.xlu0 0
  %945 = vperm.xlu0 %944, %v934
  %v946 = vpop.permute.xlu0 %945
  %949 = vset.pattern.permute.xlu0 0
  %950 = vperm.xlu0 %949, %v935
  %v951 = vpop.permute.xlu0 %950
  %v953 = vmul.f32 %v931, %v946
  %v954 = vmul.f32 %v932, %v951
  %956 = vset.pattern.permute.xlu0 0
  %957 = vperm.xlu0 %956, %v939
  %v958 = vpop.permute.xlu0 %957
  %961 = vset.pattern.permute.xlu0 0
  %962 = vperm.xlu0 %961, %v940
  %v963 = vpop.permute.xlu0 %962
  %v965 = vadd.f32 %v953, %v958
  %v966 = vadd.f32 %v954, %v963
  %968 = vset.pattern.permute.xlu0 0
  %969 = vperm.xlu0 %968, %v936
  %v970 = vpop.permute.xlu0 %969
  %973 = vset.pattern.permute.xlu0 0
  %974 = vperm.xlu0 %973, %v937
  %v975 = vpop.permute.xlu0 %974
  %v977 = vmul.f32 %v773, %v970
  %v978 = vmul.f32 %v774, %v975
  %980 = vset.pattern.permute.xlu0 0
  %981 = vperm.xlu0 %980, %v941
  %v982 = vpop.permute.xlu0 %981
  %985 = vset.pattern.permute.xlu0 0
  %986 = vperm.xlu0 %985, %v942
  %v987 = vpop.permute.xlu0 %986
  %v989 = vadd.f32 %v977, %v982
  %v990 = vadd.f32 %v978, %v987
  %s991 = scalar_lea.vmem %s6, 64
  %v992 = vld [vmem:[%s991] sm:$0xf]
  %v993 = vld [vmem:[%s991 + $0x4] sm:$0xf]
  %v994 = vld [vmem:[%s991 + $0x8] sm:$0xf]
  %v995 = vld [vmem:[%s991 + $0xc] sm:$0xf]
  %v996 = vld [vmem:[%s991 + $0x10] sm:$0xf]
  %v997 = vld [vmem:[%s991 + $0x14] sm:$0xf]
  %v998 = vld [vmem:[%s991 + $0x18] sm:$0xf]
  %v999 = vld [vmem:[%s991 + $0x1c] sm:$0xf]
  %v1000 = vpack.c.bf16 %v966, %v965
  %v1009 = vunpack.c.l.b16 %v992
  %v1010 = vunpack.c.l.b16 %v993
  %v1011 = vunpack.c.l.b16 %v994
  %v1012 = vunpack.c.l.b16 %v995
  %v1013 = vunpack.c.l.b16 %v996
  %v1014 = vunpack.c.l.b16 %v997
  %v1015 = vunpack.c.l.b16 %v998
  %v1016 = vunpack.c.l.b16 %v999
  %v1017 = vpack.c.b16 %v1010, %v1009
  %v1018 = vpack.c.b16 %v1012, %v1011
  %v1019 = vpack.c.b16 %v1014, %v1013
  %v1020 = vpack.c.b16 %v1016, %v1015
  %v1022 = vsel %vm589, %v1017, 0
  %v1025 = vsel %vm589, %v1018, 0
  %v1028 = vsel %vm589, %v1019, 0
  %v1031 = vsel %vm589, %v1020, 0
  %1033 = vmatpush.bf16.msra.mxu0 0
  %1034 = vmatpush.bf16.msra.mxu0 0
  %1035 = vmatpush.bf16.msra.mxu0 0
  %1036 = vmatpush.bf16.msra.mxu0 0
  %1037 = vmatpush.bf16.msra.mxu0 0
  %1038 = vmatpush.bf16.msra.mxu0 0
  %1039 = vmatpush.bf16.msra.mxu0 0
  %1040 = vmatpush.bf16.msra.mxu0 %v1000
  %1041 = vmatmul.bf16.gmra.mxu0 %v1022
  %v1042 = vpop.f32.mrf.mxu0
  %v1043 = vadd.f32 %v465, %v1042
  %v1044 = vpop.f32.mrf.mxu0
  %v1045 = vadd.f32 %v467, %v1044
  %1046 = vmatmul.bf16.gmra.mxu0 %v1025
  %v1047 = vpop.f32.mrf.mxu0
  %v1048 = vadd.f32 %v470, %v1047
  %v1049 = vpop.f32.mrf.mxu0
  %v1050 = vadd.f32 %v472, %v1049
  %1051 = vmatmul.bf16.gmra.mxu0 %v1028
  %v1052 = vpop.f32.mrf.mxu0
  %v1053 = vadd.f32 %v475, %v1052
  %v1054 = vpop.f32.mrf.mxu0
  %v1055 = vadd.f32 %v477, %v1054
  %1056 = vmatmul.bf16.gmra.mxu0 %v1031
  %v1057 = vpop.f32.mrf.mxu0
  %v1058 = vadd.f32 %v480, %v1057
  %v1059 = vpop.f32.mrf.mxu0
  %v1060 = vadd.f32 %v482, %v1059
  %1061 = vdwg.mxu0
  %v1062 = vmax.f32 %v1043, 0.0
  %v1063 = vmax.f32 %v1045, 0.0
  %v1064 = vmax.f32 %v1048, 0.0
  %v1065 = vmax.f32 %v1050, 0.0
  %v1066 = vmax.f32 %v1053, 0.0
  %v1067 = vmax.f32 %v1055, 0.0
  %v1068 = vmax.f32 %v1058, 0.0
  %v1069 = vmax.f32 %v1060, 0.0
  %v1070 = vpack.c.bf16 %v1063, %v1062
  %v1071 = vpack.c.bf16 %v1065, %v1064
  %v1072 = vpack.c.bf16 %v1067, %v1066
  %v1073 = vpack.c.bf16 %v1069, %v1068
  %s1074 = scalar_lea.vmem %s10, 32
  %v1075 = vld [vmem:[%s1074] sm:$0xf]
  %v1076 = vld [vmem:[%s1074 + $0x4] sm:$0xf]
  %v1077 = vld [vmem:[%s1074 + $0x8] sm:$0xf]
  %v1078 = vld [vmem:[%s1074 + $0xc] sm:$0xf]
  %s1079 = scalar_lea.vmem %s11, 64
  %v1080 = vld [vmem:[%s1079] sm:$0xff]
  %v1081 = vld [vmem:[%s1079 + $0x8] sm:$0xff]
  %v1082 = vld [vmem:[%s1079 + $0x10] sm:$0xff]
  %v1083 = vld [vmem:[%s1079 + $0x18] sm:$0xff]
  %1085 = vset.pattern.permute.xlu0 0
  %1086 = vperm.xlu0 %1085, %v1080
  %v1087 = vpop.permute.xlu0 %1086
  %1090 = vset.pattern.permute.xlu0 0
  %1091 = vperm.xlu0 %1090, %v1081
  %v1092 = vpop.permute.xlu0 %1091
  %1095 = vset.pattern.permute.xlu0 0
  %1096 = vperm.xlu0 %1095, %v1082
  %v1097 = vpop.permute.xlu0 %1096
  %1100 = vset.pattern.permute.xlu0 0
  %1101 = vperm.xlu0 %1100, %v1083
  %v1102 = vpop.permute.xlu0 %1101
  %v1108 = vunpack.c.l.b16 %v1075
  %v1109 = vunpack.c.l.b16 %v1076
  %v1110 = vunpack.c.l.b16 %v1077
  %v1111 = vunpack.c.l.b16 %v1078
  %v1112 = vpack.c.b16 %v1109, %v1108
  %v1113 = vpack.c.b16 %v1111, %v1110
  %v1115 = vsel %vm681, %v1112, 0
  %v1118 = vsel %vm681, %v1113, 0
  %1120 = vmatpush.bf16.msra.mxu0 0
  %1121 = vmatpush.bf16.msra.mxu0 0
  %1122 = vmatpush.bf16.msra.mxu0 0
  %1123 = vmatpush.bf16.msra.mxu0 0
  %1124 = vmatpush.bf16.msra.mxu0 %v1073
  %1125 = vmatpush.bf16.msra.mxu0 %v1072
  %1126 = vmatpush.bf16.msra.mxu0 %v1071
  %1127 = vmatpush.bf16.msra.mxu0 %v1070
  %1128 = vmatmul.bf16.gmra.mxu0 %v1115
  %v1129 = vpop.f32.mrf.mxu0
  %v1130 = vadd.f32 %v1087, %v1129
  %v1131 = vpop.f32.mrf.mxu0
  %v1132 = vadd.f32 %v1092, %v1131
  %1133 = vmatmul.bf16.gmra.mxu0 %v1118
  %v1134 = vpop.f32.mrf.mxu0
  %v1135 = vadd.f32 %v1097, %v1134
  %v1136 = vpop.f32.mrf.mxu0
  %v1137 = vadd.f32 %v1102, %v1136
  %1138 = vdwg.mxu0
  %v1139 = vtanh.pop %v1130
  %v1140 = vtanh.pop %v1132
  %v1141 = vmul.f32 %v1139, 1.442695
  %v1142 = vpow.pop %v1141
  %v1143 = vmul.f32 %v1140, 1.442695
  %v1144 = vpow.pop %v1143
  %v1145 = vmul.f32 %v989, %v1142
  %v1146 = vmul.f32 %v990, %v1144
  %v1147 = vadd.f32 %v1145, %v1135
  %v1148 = vadd.f32 %v1146, %v1137
  %s1149 = scalar_lea.vmem %s2, 96
  %v1150 = vld [vmem:[%s1149] sm:$0xff]
  %v1151 = vld [vmem:[%s1149 + $0x8] sm:$0xff]
  %v1152 = vld [vmem:[%s1149 + $0x10] sm:$0xff]
  %v1153 = vld [vmem:[%s1149 + $0x18] sm:$0xff]
  %s1154 = scalar_lea.vmem %s3, 96
  %v1155 = vld [vmem:[%s1154] sm:$0xff]
  %v1156 = vld [vmem:[%s1154 + $0x8] sm:$0xff]
  %v1157 = vld [vmem:[%s1154 + $0x10] sm:$0xff]
  %v1158 = vld [vmem:[%s1154 + $0x18] sm:$0xff]
  %1160 = vset.pattern.permute.xlu0 0
  %1161 = vperm.xlu0 %1160, %v1150
  %v1162 = vpop.permute.xlu0 %1161
  %1165 = vset.pattern.permute.xlu0 0
  %1166 = vperm.xlu0 %1165, %v1151
  %v1167 = vpop.permute.xlu0 %1166
  %v1169 = vmul.f32 %v965, %v1162
  %v1170 = vmul.f32 %v966, %v1167
  %1172 = vset.pattern.permute.xlu0 0
  %1173 = vperm.xlu0 %1172, %v1155
  %v1174 = vpop.permute.xlu0 %1173
  %1177 = vset.pattern.permute.xlu0 0
  %1178 = vperm.xlu0 %1177, %v1156
  %v1179 = vpop.permute.xlu0 %1178
  %v1181 = vadd.f32 %v1169, %v1174
  %v1182 = vadd.f32 %v1170, %v1179
  %1184 = vset.pattern.permute.xlu0 0
  %1185 = vperm.xlu0 %1184, %v1152
  %v1186 = vpop.permute.xlu0 %1185
  %1189 = vset.pattern.permute.xlu0 0
  %1190 = vperm.xlu0 %1189, %v1153
  %v1191 = vpop.permute.xlu0 %1190
  %v1193 = vmul.f32 %v1147, %v1186
  %v1194 = vmul.f32 %v1148, %v1191
  %1196 = vset.pattern.permute.xlu0 0
  %1197 = vperm.xlu0 %1196, %v1157
  %v1198 = vpop.permute.xlu0 %1197
  %1201 = vset.pattern.permute.xlu0 0
  %1202 = vperm.xlu0 %1201, %v1158
  %v1203 = vpop.permute.xlu0 %1202
  %v1205 = vadd.f32 %v1193, %v1198
  %v1206 = vadd.f32 %v1194, %v1203
  %s1207 = scalar_lea.vmem %s6, 96
  %v1208 = vld [vmem:[%s1207] sm:$0xf]
  %v1209 = vld [vmem:[%s1207 + $0x4] sm:$0xf]
  %v1210 = vld [vmem:[%s1207 + $0x8] sm:$0xf]
  %v1211 = vld [vmem:[%s1207 + $0xc] sm:$0xf]
  %v1212 = vld [vmem:[%s1207 + $0x10] sm:$0xf]
  %v1213 = vld [vmem:[%s1207 + $0x14] sm:$0xf]
  %v1214 = vld [vmem:[%s1207 + $0x18] sm:$0xf]
  %v1215 = vld [vmem:[%s1207 + $0x1c] sm:$0xf]
  %v1216 = vpack.c.bf16 %v1206, %v1205
  %v1225 = vunpack.c.l.b16 %v1208
  %v1226 = vunpack.c.l.b16 %v1209
  %v1227 = vunpack.c.l.b16 %v1210
  %v1228 = vunpack.c.l.b16 %v1211
  %v1229 = vunpack.c.l.b16 %v1212
  %v1230 = vunpack.c.l.b16 %v1213
  %v1231 = vunpack.c.l.b16 %v1214
  %v1232 = vunpack.c.l.b16 %v1215
  %v1233 = vpack.c.b16 %v1226, %v1225
  %v1234 = vpack.c.b16 %v1228, %v1227
  %v1235 = vpack.c.b16 %v1230, %v1229
  %v1236 = vpack.c.b16 %v1232, %v1231
  %v1238 = vsel %vm589, %v1233, 0
  %v1241 = vsel %vm589, %v1234, 0
  %v1244 = vsel %vm589, %v1235, 0
  %v1247 = vsel %vm589, %v1236, 0
  %1249 = vmatpush.bf16.msra.mxu0 0
  %1250 = vmatpush.bf16.msra.mxu0 0
  %1251 = vmatpush.bf16.msra.mxu0 0
  %1252 = vmatpush.bf16.msra.mxu0 0
  %1253 = vmatpush.bf16.msra.mxu0 0
  %1254 = vmatpush.bf16.msra.mxu0 0
  %1255 = vmatpush.bf16.msra.mxu0 0
  %1256 = vmatpush.bf16.msra.mxu0 %v1216
  %1257 = vmatmul.bf16.gmra.mxu0 %v1238
  %v1258 = vpop.f32.mrf.mxu0
  %v1259 = vadd.f32 %v485, %v1258
  %v1260 = vpop.f32.mrf.mxu0
  %v1261 = vadd.f32 %v487, %v1260
  %1262 = vmatmul.bf16.gmra.mxu0 %v1241
  %v1263 = vpop.f32.mrf.mxu0
  %v1264 = vadd.f32 %v490, %v1263
  %v1265 = vpop.f32.mrf.mxu0
  %v1266 = vadd.f32 %v492, %v1265
  %1267 = vmatmul.bf16.gmra.mxu0 %v1244
  %v1268 = vpop.f32.mrf.mxu0
  %v1269 = vadd.f32 %v495, %v1268
  %v1270 = vpop.f32.mrf.mxu0
  %v1271 = vadd.f32 %v497, %v1270
  %1272 = vmatmul.bf16.gmra.mxu0 %v1247
  %v1273 = vpop.f32.mrf.mxu0
  %v1274 = vadd.f32 %v500, %v1273
  %v1275 = vpop.f32.mrf.mxu0
  %v1276 = vadd.f32 %v502, %v1275
  %1277 = vdwg.mxu0
  %v1278 = vmax.f32 %v1259, 0.0
  %v1279 = vmax.f32 %v1261, 0.0
  %v1280 = vmax.f32 %v1264, 0.0
  %v1281 = vmax.f32 %v1266, 0.0
  %v1282 = vmax.f32 %v1269, 0.0
  %v1283 = vmax.f32 %v1271, 0.0
  %v1284 = vmax.f32 %v1274, 0.0
  %v1285 = vmax.f32 %v1276, 0.0
  %v1286 = vpack.c.bf16 %v1279, %v1278
  %v1287 = vpack.c.bf16 %v1281, %v1280
  %v1288 = vpack.c.bf16 %v1283, %v1282
  %v1289 = vpack.c.bf16 %v1285, %v1284
  %s1290 = scalar_lea.vmem %s10, 48
  %v1291 = vld [vmem:[%s1290] sm:$0xf]
  %v1292 = vld [vmem:[%s1290 + $0x4] sm:$0xf]
  %v1293 = vld [vmem:[%s1290 + $0x8] sm:$0xf]
  %v1294 = vld [vmem:[%s1290 + $0xc] sm:$0xf]
  %s1295 = scalar_lea.vmem %s11, 96
  %v1296 = vld [vmem:[%s1295] sm:$0xff]
  %v1297 = vld [vmem:[%s1295 + $0x8] sm:$0xff]
  %v1298 = vld [vmem:[%s1295 + $0x10] sm:$0xff]
  %v1299 = vld [vmem:[%s1295 + $0x18] sm:$0xff]
  %1301 = vset.pattern.permute.xlu0 0
  %1302 = vperm.xlu0 %1301, %v1296
  %v1303 = vpop.permute.xlu0 %1302
  %1306 = vset.pattern.permute.xlu0 0
  %1307 = vperm.xlu0 %1306, %v1297
  %v1308 = vpop.permute.xlu0 %1307
  %1311 = vset.pattern.permute.xlu0 0
  %1312 = vperm.xlu0 %1311, %v1298
  %v1313 = vpop.permute.xlu0 %1312
  %1316 = vset.pattern.permute.xlu0 0
  %1317 = vperm.xlu0 %1316, %v1299
  %v1318 = vpop.permute.xlu0 %1317
  %v1324 = vunpack.c.l.b16 %v1291
  %v1325 = vunpack.c.l.b16 %v1292
  %v1326 = vunpack.c.l.b16 %v1293
  %v1327 = vunpack.c.l.b16 %v1294
  %v1328 = vpack.c.b16 %v1325, %v1324
  %v1329 = vpack.c.b16 %v1327, %v1326
  %v1331 = vsel %vm681, %v1328, 0
  %v1334 = vsel %vm681, %v1329, 0
  %1336 = vmatpush.bf16.msra.mxu0 0
  %1337 = vmatpush.bf16.msra.mxu0 0
  %1338 = vmatpush.bf16.msra.mxu0 0
  %1339 = vmatpush.bf16.msra.mxu0 0
  %1340 = vmatpush.bf16.msra.mxu0 %v1289
  %1341 = vmatpush.bf16.msra.mxu0 %v1288
  %1342 = vmatpush.bf16.msra.mxu0 %v1287
  %1343 = vmatpush.bf16.msra.mxu0 %v1286
  %1344 = vmatmul.bf16.gmra.mxu0 %v1331
  %v1345 = vpop.f32.mrf.mxu0
  %v1346 = vadd.f32 %v1303, %v1345
  %v1347 = vpop.f32.mrf.mxu0
  %v1348 = vadd.f32 %v1308, %v1347
  %1349 = vmatmul.bf16.gmra.mxu0 %v1334
  %v1350 = vpop.f32.mrf.mxu0
  %v1351 = vadd.f32 %v1313, %v1350
  %v1352 = vpop.f32.mrf.mxu0
  %v1353 = vadd.f32 %v1318, %v1352
  %1354 = vdwg.mxu0
  %v1355 = vtanh.pop %v1346
  %v1356 = vtanh.pop %v1348
  %v1357 = vmul.f32 %v1355, 1.442695
  %v1358 = vpow.pop %v1357
  %v1359 = vmul.f32 %v1356, 1.442695
  %v1360 = vpow.pop %v1359
  %v1361 = vmul.f32 %v1181, %v1358
  %v1362 = vmul.f32 %v1182, %v1360
  %v1363 = vadd.f32 %v1361, %v1351
  %v1364 = vadd.f32 %v1362, %v1353
  %s1365 = scalar_lea.vmem %s9, 192
  %v1366 = vld [vmem:[%s1365] sm:$0xff]
  %v1367 = vld [vmem:[%s1365 + $0x8] sm:$0xff]
  %v1368 = vld [vmem:[%s1365 + $0x10] sm:$0xff]
  %v1369 = vld [vmem:[%s1365 + $0x18] sm:$0xff]
  %v1370 = vld [vmem:[%s1365 + $0x20] sm:$0xff]
  %v1371 = vld [vmem:[%s1365 + $0x28] sm:$0xff]
  %v1372 = vld [vmem:[%s1365 + $0x30] sm:$0xff]
  %v1373 = vld [vmem:[%s1365 + $0x38] sm:$0xff]
  %1375 = vset.pattern.permute.xlu0 0
  %1376 = vperm.xlu0 %1375, %v1366
  %v1377 = vpop.permute.xlu0 %1376
  %1380 = vset.pattern.permute.xlu0 0
  %1381 = vperm.xlu0 %1380, %v1367
  %v1382 = vpop.permute.xlu0 %1381
  %1385 = vset.pattern.permute.xlu0 0
  %1386 = vperm.xlu0 %1385, %v1368
  %v1387 = vpop.permute.xlu0 %1386
  %1390 = vset.pattern.permute.xlu0 0
  %1391 = vperm.xlu0 %1390, %v1369
  %v1392 = vpop.permute.xlu0 %1391
  %1395 = vset.pattern.permute.xlu0 0
  %1396 = vperm.xlu0 %1395, %v1370
  %v1397 = vpop.permute.xlu0 %1396
  %1400 = vset.pattern.permute.xlu0 0
  %1401 = vperm.xlu0 %1400, %v1371
  %v1402 = vpop.permute.xlu0 %1401
  %1405 = vset.pattern.permute.xlu0 0
  %1406 = vperm.xlu0 %1405, %v1372
  %v1407 = vpop.permute.xlu0 %1406
  %1410 = vset.pattern.permute.xlu0 0
  %1411 = vperm.xlu0 %1410, %v1373
  %v1412 = vpop.permute.xlu0 %1411
  %1414 = vmatpush.bf16.msra.mxu0 0
  %1415 = vmatpush.bf16.msra.mxu0 0
  %1416 = vmatpush.bf16.msra.mxu0 0
  %1417 = vmatpush.bf16.msra.mxu0 0
  %1418 = vmatpush.bf16.msra.mxu0 0
  %1419 = vmatpush.bf16.msra.mxu0 0
  %1420 = vmatpush.bf16.msra.mxu0 0
  %1421 = vmatpush.bf16.msra.mxu0 %v1216
  %1422 = vmatmul.bf16.gmra.mxu0 %v1238
  %v1423 = vpop.f32.mrf.mxu0
  %v1424 = vadd.f32 %v1377, %v1423
  %v1425 = vpop.f32.mrf.mxu0
  %v1426 = vadd.f32 %v1382, %v1425
  %1427 = vmatmul.bf16.gmra.mxu0 %v1241
  %v1428 = vpop.f32.mrf.mxu0
  %v1429 = vadd.f32 %v1387, %v1428
  %v1430 = vpop.f32.mrf.mxu0
  %v1431 = vadd.f32 %v1392, %v1430
  %1432 = vmatmul.bf16.gmra.mxu0 %v1244
  %v1433 = vpop.f32.mrf.mxu0
  %v1434 = vadd.f32 %v1397, %v1433
  %v1435 = vpop.f32.mrf.mxu0
  %v1436 = vadd.f32 %v1402, %v1435
  %1437 = vmatmul.bf16.gmra.mxu0 %v1247
  %v1438 = vpop.f32.mrf.mxu0
  %v1439 = vadd.f32 %v1407, %v1438
  %v1440 = vpop.f32.mrf.mxu0
  %v1441 = vadd.f32 %v1412, %v1440
  %1442 = vdwg.mxu0
  %v1443 = vmax.f32 %v1424, 0.0
  %v1444 = vmax.f32 %v1426, 0.0
  %v1445 = vmax.f32 %v1429, 0.0
  %v1446 = vmax.f32 %v1431, 0.0
  %v1447 = vmax.f32 %v1434, 0.0
  %v1448 = vmax.f32 %v1436, 0.0
  %v1449 = vmax.f32 %v1439, 0.0
  %v1450 = vmax.f32 %v1441, 0.0
  %v1451 = vpack.c.bf16 %v1444, %v1443
  %v1452 = vpack.c.bf16 %v1446, %v1445
  %v1453 = vpack.c.bf16 %v1448, %v1447
  %v1454 = vpack.c.bf16 %v1450, %v1449
  %1455 = vmatpush.bf16.msra.mxu0 0
  %1456 = vmatpush.bf16.msra.mxu0 0
  %1457 = vmatpush.bf16.msra.mxu0 0
  %1458 = vmatpush.bf16.msra.mxu0 0
  %1459 = vmatpush.bf16.msra.mxu0 %v1454
  %1460 = vmatpush.bf16.msra.mxu0 %v1453
  %1461 = vmatpush.bf16.msra.mxu0 %v1452
  %1462 = vmatpush.bf16.msra.mxu0 %v1451
  %1463 = vmatmul.bf16.gmra.mxu0 %v1331
  %v1464 = vpop.f32.mrf.mxu0
  %v1465 = vadd.f32 %v1303, %v1464
  %v1466 = vpop.f32.mrf.mxu0
  %v1467 = vadd.f32 %v1308, %v1466
  %1468 = vmatmul.bf16.gmra.mxu0 %v1334
  %v1469 = vpop.f32.mrf.mxu0
  %v1470 = vadd.f32 %v1313, %v1469
  %v1471 = vpop.f32.mrf.mxu0
  %v1472 = vadd.f32 %v1318, %v1471
  %1473 = vdwg.mxu0
  %v1474 = vtanh.pop %v1465
  %v1475 = vtanh.pop %v1467
  %v1476 = vsub.f32 %v1363, %v1470
  %v1477 = vsub.f32 %v1364, %v1472
  %v1478 = vsub.f32 0.0, %v1474
  %v1479 = vsub.f32 0.0, %v1475
  %v1480 = vmul.f32 %v1478, 1.442695
  %v1481 = vpow.pop %v1480
  %v1482 = vmul.f32 %v1479, 1.442695
  %v1483 = vpow.pop %v1482
  %v1484 = vmul.f32 %v1476, %v1481
  %v1485 = vmul.f32 %v1477, %v1483
  %s1486 = scalar_lea.vmem %s4, 96
  %v1487 = vld [vmem:[%s1486] sm:$0xff]
  %v1488 = vld [vmem:[%s1486 + $0x8] sm:$0xff]
  %v1489 = vld [vmem:[%s1486 + $0x10] sm:$0xff]
  %v1490 = vld [vmem:[%s1486 + $0x18] sm:$0xff]
  %s1491 = scalar_lea.vmem %s5, 96
  %v1492 = vld [vmem:[%s1491] sm:$0xff]
  %v1493 = vld [vmem:[%s1491 + $0x8] sm:$0xff]
  %v1494 = vld [vmem:[%s1491 + $0x10] sm:$0xff]
  %v1495 = vld [vmem:[%s1491 + $0x18] sm:$0xff]
  %1497 = vset.pattern.permute.xlu0 0
  %1498 = vperm.xlu0 %1497, %v1487
  %v1499 = vpop.permute.xlu0 %1498
  %1502 = vset.pattern.permute.xlu0 0
  %1503 = vperm.xlu0 %1502, %v1488
  %v1504 = vpop.permute.xlu0 %1503
  %v1506 = vmul.f32 %v1484, %v1499
  %v1507 = vmul.f32 %v1485, %v1504
  %1509 = vset.pattern.permute.xlu0 0
  %1510 = vperm.xlu0 %1509, %v1492
  %v1511 = vpop.permute.xlu0 %1510
  %1514 = vset.pattern.permute.xlu0 0
  %1515 = vperm.xlu0 %1514, %v1493
  %v1516 = vpop.permute.xlu0 %1515
  %v1518 = vsub.f32 %v1506, %v1511
  %v1519 = vsub.f32 %v1507, %v1516
  %1521 = vset.pattern.permute.xlu0 0
  %1522 = vperm.xlu0 %1521, %v1489
  %v1523 = vpop.permute.xlu0 %1522
  %1526 = vset.pattern.permute.xlu0 0
  %1527 = vperm.xlu0 %1526, %v1490
  %v1528 = vpop.permute.xlu0 %1527
  %v1530 = vmul.f32 %v1205, %v1523
  %v1531 = vmul.f32 %v1206, %v1528
  %1533 = vset.pattern.permute.xlu0 0
  %1534 = vperm.xlu0 %1533, %v1494
  %v1535 = vpop.permute.xlu0 %1534
  %1538 = vset.pattern.permute.xlu0 0
  %1539 = vperm.xlu0 %1538, %v1495
  %v1540 = vpop.permute.xlu0 %1539
  %v1542 = vsub.f32 %v1530, %v1535
  %v1543 = vsub.f32 %v1531, %v1540
  %s1544 = scalar_lea.vmem %s9, 128
  %v1545 = vld [vmem:[%s1544] sm:$0xff]
  %v1546 = vld [vmem:[%s1544 + $0x8] sm:$0xff]
  %v1547 = vld [vmem:[%s1544 + $0x10] sm:$0xff]
  %v1548 = vld [vmem:[%s1544 + $0x18] sm:$0xff]
  %v1549 = vld [vmem:[%s1544 + $0x20] sm:$0xff]
  %v1550 = vld [vmem:[%s1544 + $0x28] sm:$0xff]
  %v1551 = vld [vmem:[%s1544 + $0x30] sm:$0xff]
  %v1552 = vld [vmem:[%s1544 + $0x38] sm:$0xff]
  %v1553 = vpack.c.bf16 %v1519, %v1518
  %1555 = vset.pattern.permute.xlu0 0
  %1556 = vperm.xlu0 %1555, %v1545
  %v1557 = vpop.permute.xlu0 %1556
  %1560 = vset.pattern.permute.xlu0 0
  %1561 = vperm.xlu0 %1560, %v1546
  %v1562 = vpop.permute.xlu0 %1561
  %1565 = vset.pattern.permute.xlu0 0
  %1566 = vperm.xlu0 %1565, %v1547
  %v1567 = vpop.permute.xlu0 %1566
  %1570 = vset.pattern.permute.xlu0 0
  %1571 = vperm.xlu0 %1570, %v1548
  %v1572 = vpop.permute.xlu0 %1571
  %1575 = vset.pattern.permute.xlu0 0
  %1576 = vperm.xlu0 %1575, %v1549
  %v1577 = vpop.permute.xlu0 %1576
  %1580 = vset.pattern.permute.xlu0 0
  %1581 = vperm.xlu0 %1580, %v1550
  %v1582 = vpop.permute.xlu0 %1581
  %1585 = vset.pattern.permute.xlu0 0
  %1586 = vperm.xlu0 %1585, %v1551
  %v1587 = vpop.permute.xlu0 %1586
  %1590 = vset.pattern.permute.xlu0 0
  %1591 = vperm.xlu0 %1590, %v1552
  %v1592 = vpop.permute.xlu0 %1591
  %1594 = vmatpush.bf16.msra.mxu0 0
  %1595 = vmatpush.bf16.msra.mxu0 0
  %1596 = vmatpush.bf16.msra.mxu0 0
  %1597 = vmatpush.bf16.msra.mxu0 0
  %1598 = vmatpush.bf16.msra.mxu0 0
  %1599 = vmatpush.bf16.msra.mxu0 0
  %1600 = vmatpush.bf16.msra.mxu0 0
  %1601 = vmatpush.bf16.msra.mxu0 %v1553
  %1602 = vmatmul.bf16.gmra.mxu0 %v1022
  %v1603 = vpop.f32.mrf.mxu0
  %v1604 = vadd.f32 %v1557, %v1603
  %v1605 = vpop.f32.mrf.mxu0
  %v1606 = vadd.f32 %v1562, %v1605
  %1607 = vmatmul.bf16.gmra.mxu0 %v1025
  %v1608 = vpop.f32.mrf.mxu0
  %v1609 = vadd.f32 %v1567, %v1608
  %v1610 = vpop.f32.mrf.mxu0
  %v1611 = vadd.f32 %v1572, %v1610
  %1612 = vmatmul.bf16.gmra.mxu0 %v1028
  %v1613 = vpop.f32.mrf.mxu0
  %v1614 = vadd.f32 %v1577, %v1613
  %v1615 = vpop.f32.mrf.mxu0
  %v1616 = vadd.f32 %v1582, %v1615
  %1617 = vmatmul.bf16.gmra.mxu0 %v1031
  %v1618 = vpop.f32.mrf.mxu0
  %v1619 = vadd.f32 %v1587, %v1618
  %v1620 = vpop.f32.mrf.mxu0
  %v1621 = vadd.f32 %v1592, %v1620
  %1622 = vdwg.mxu0
  %v1623 = vmax.f32 %v1604, 0.0
  %v1624 = vmax.f32 %v1606, 0.0
  %v1625 = vmax.f32 %v1609, 0.0
  %v1626 = vmax.f32 %v1611, 0.0
  %v1627 = vmax.f32 %v1614, 0.0
  %v1628 = vmax.f32 %v1616, 0.0
  %v1629 = vmax.f32 %v1619, 0.0
  %v1630 = vmax.f32 %v1621, 0.0
  %v1631 = vpack.c.bf16 %v1624, %v1623
  %v1632 = vpack.c.bf16 %v1626, %v1625
  %v1633 = vpack.c.bf16 %v1628, %v1627
  %v1634 = vpack.c.bf16 %v1630, %v1629
  %1635 = vmatpush.bf16.msra.mxu0 0
  %1636 = vmatpush.bf16.msra.mxu0 0
  %1637 = vmatpush.bf16.msra.mxu0 0
  %1638 = vmatpush.bf16.msra.mxu0 0
  %1639 = vmatpush.bf16.msra.mxu0 %v1634
  %1640 = vmatpush.bf16.msra.mxu0 %v1633
  %1641 = vmatpush.bf16.msra.mxu0 %v1632
  %1642 = vmatpush.bf16.msra.mxu0 %v1631
  %1643 = vmatmul.bf16.gmra.mxu0 %v1115
  %v1644 = vpop.f32.mrf.mxu0
  %v1645 = vadd.f32 %v1087, %v1644
  %v1646 = vpop.f32.mrf.mxu0
  %v1647 = vadd.f32 %v1092, %v1646
  %1648 = vmatmul.bf16.gmra.mxu0 %v1118
  %v1649 = vpop.f32.mrf.mxu0
  %v1650 = vadd.f32 %v1097, %v1649
  %v1651 = vpop.f32.mrf.mxu0
  %v1652 = vadd.f32 %v1102, %v1651
  %1653 = vdwg.mxu0
  %v1654 = vtanh.pop %v1645
  %v1655 = vtanh.pop %v1647
  %v1656 = vsub.f32 %v1542, %v1650
  %v1657 = vsub.f32 %v1543, %v1652
  %v1658 = vsub.f32 0.0, %v1654
  %v1659 = vsub.f32 0.0, %v1655
  %v1660 = vmul.f32 %v1658, 1.442695
  %v1661 = vpow.pop %v1660
  %v1662 = vmul.f32 %v1659, 1.442695
  %v1663 = vpow.pop %v1662
  %v1664 = vmul.f32 %v1656, %v1661
  %v1665 = vmul.f32 %v1657, %v1663
  %s1666 = scalar_lea.vmem %s4, 64
  %v1667 = vld [vmem:[%s1666] sm:$0xff]
  %v1668 = vld [vmem:[%s1666 + $0x8] sm:$0xff]
  %v1669 = vld [vmem:[%s1666 + $0x10] sm:$0xff]
  %v1670 = vld [vmem:[%s1666 + $0x18] sm:$0xff]
  %s1671 = scalar_lea.vmem %s5, 64
  %v1672 = vld [vmem:[%s1671] sm:$0xff]
  %v1673 = vld [vmem:[%s1671 + $0x8] sm:$0xff]
  %v1674 = vld [vmem:[%s1671 + $0x10] sm:$0xff]
  %v1675 = vld [vmem:[%s1671 + $0x18] sm:$0xff]
  %1677 = vset.pattern.permute.xlu0 0
  %1678 = vperm.xlu0 %1677, %v1667
  %v1679 = vpop.permute.xlu0 %1678
  %1682 = vset.pattern.permute.xlu0 0
  %1683 = vperm.xlu0 %1682, %v1668
  %v1684 = vpop.permute.xlu0 %1683
  %v1686 = vmul.f32 %v1518, %v1679
  %v1687 = vmul.f32 %v1519, %v1684
  %1689 = vset.pattern.permute.xlu0 0
  %1690 = vperm.xlu0 %1689, %v1672
  %v1691 = vpop.permute.xlu0 %1690
  %1694 = vset.pattern.permute.xlu0 0
  %1695 = vperm.xlu0 %1694, %v1673
  %v1696 = vpop.permute.xlu0 %1695
  %v1698 = vsub.f32 %v1686, %v1691
  %v1699 = vsub.f32 %v1687, %v1696
  %1701 = vset.pattern.permute.xlu0 0
  %1702 = vperm.xlu0 %1701, %v1669
  %v1703 = vpop.permute.xlu0 %1702
  %1706 = vset.pattern.permute.xlu0 0
  %1707 = vperm.xlu0 %1706, %v1670
  %v1708 = vpop.permute.xlu0 %1707
  %v1710 = vmul.f32 %v1664, %v1703
  %v1711 = vmul.f32 %v1665, %v1708
  %1713 = vset.pattern.permute.xlu0 0
  %1714 = vperm.xlu0 %1713, %v1674
  %v1715 = vpop.permute.xlu0 %1714
  %1718 = vset.pattern.permute.xlu0 0
  %1719 = vperm.xlu0 %1718, %v1675
  %v1720 = vpop.permute.xlu0 %1719
  %v1722 = vsub.f32 %v1710, %v1715
  %v1723 = vsub.f32 %v1711, %v1720
  %s1724 = scalar_lea.vmem %s9, 64
  %v1725 = vld [vmem:[%s1724] sm:$0xff]
  %v1726 = vld [vmem:[%s1724 + $0x8] sm:$0xff]
  %v1727 = vld [vmem:[%s1724 + $0x10] sm:$0xff]
  %v1728 = vld [vmem:[%s1724 + $0x18] sm:$0xff]
  %v1729 = vld [vmem:[%s1724 + $0x20] sm:$0xff]
  %v1730 = vld [vmem:[%s1724 + $0x28] sm:$0xff]
  %v1731 = vld [vmem:[%s1724 + $0x30] sm:$0xff]
  %v1732 = vld [vmem:[%s1724 + $0x38] sm:$0xff]
  %v1733 = vpack.c.bf16 %v1723, %v1722
  %1735 = vset.pattern.permute.xlu0 0
  %1736 = vperm.xlu0 %1735, %v1725
  %v1737 = vpop.permute.xlu0 %1736
  %1740 = vset.pattern.permute.xlu0 0
  %1741 = vperm.xlu0 %1740, %v1726
  %v1742 = vpop.permute.xlu0 %1741
  %1745 = vset.pattern.permute.xlu0 0
  %1746 = vperm.xlu0 %1745, %v1727
  %v1747 = vpop.permute.xlu0 %1746
  %1750 = vset.pattern.permute.xlu0 0
  %1751 = vperm.xlu0 %1750, %v1728
  %v1752 = vpop.permute.xlu0 %1751
  %1755 = vset.pattern.permute.xlu0 0
  %1756 = vperm.xlu0 %1755, %v1729
  %v1757 = vpop.permute.xlu0 %1756
  %1760 = vset.pattern.permute.xlu0 0
  %1761 = vperm.xlu0 %1760, %v1730
  %v1762 = vpop.permute.xlu0 %1761
  %1765 = vset.pattern.permute.xlu0 0
  %1766 = vperm.xlu0 %1765, %v1731
  %v1767 = vpop.permute.xlu0 %1766
  %1770 = vset.pattern.permute.xlu0 0
  %1771 = vperm.xlu0 %1770, %v1732
  %v1772 = vpop.permute.xlu0 %1771
  %1774 = vmatpush.bf16.msra.mxu0 0
  %1775 = vmatpush.bf16.msra.mxu0 0
  %1776 = vmatpush.bf16.msra.mxu0 0
  %1777 = vmatpush.bf16.msra.mxu0 0
  %1778 = vmatpush.bf16.msra.mxu0 0
  %1779 = vmatpush.bf16.msra.mxu0 0
  %1780 = vmatpush.bf16.msra.mxu0 0
  %1781 = vmatpush.bf16.msra.mxu0 %v1733
  %1782 = vmatmul.bf16.gmra.mxu0 %v806
  %v1783 = vpop.f32.mrf.mxu0
  %v1784 = vadd.f32 %v1737, %v1783
  %v1785 = vpop.f32.mrf.mxu0
  %v1786 = vadd.f32 %v1742, %v1785
  %1787 = vmatmul.bf16.gmra.mxu0 %v809
  %v1788 = vpop.f32.mrf.mxu0
  %v1789 = vadd.f32 %v1747, %v1788
  %v1790 = vpop.f32.mrf.mxu0
  %v1791 = vadd.f32 %v1752, %v1790
  %1792 = vmatmul.bf16.gmra.mxu0 %v812
  %v1793 = vpop.f32.mrf.mxu0
  %v1794 = vadd.f32 %v1757, %v1793
  %v1795 = vpop.f32.mrf.mxu0
  %v1796 = vadd.f32 %v1762, %v1795
  %1797 = vmatmul.bf16.gmra.mxu0 %v815
  %v1798 = vpop.f32.mrf.mxu0
  %v1799 = vadd.f32 %v1767, %v1798
  %v1800 = vpop.f32.mrf.mxu0
  %v1801 = vadd.f32 %v1772, %v1800
  %1802 = vdwg.mxu0
  %v1803 = vmax.f32 %v1784, 0.0
  %v1804 = vmax.f32 %v1786, 0.0
  %v1805 = vmax.f32 %v1789, 0.0
  %v1806 = vmax.f32 %v1791, 0.0
  %v1807 = vmax.f32 %v1794, 0.0
  %v1808 = vmax.f32 %v1796, 0.0
  %v1809 = vmax.f32 %v1799, 0.0
  %v1810 = vmax.f32 %v1801, 0.0
  %v1811 = vpack.c.bf16 %v1804, %v1803
  %v1812 = vpack.c.bf16 %v1806, %v1805
  %v1813 = vpack.c.bf16 %v1808, %v1807
  %v1814 = vpack.c.bf16 %v1810, %v1809
  %1815 = vmatpush.bf16.msra.mxu0 0
  %1816 = vmatpush.bf16.msra.mxu0 0
  %1817 = vmatpush.bf16.msra.mxu0 0
  %1818 = vmatpush.bf16.msra.mxu0 0
  %1819 = vmatpush.bf16.msra.mxu0 %v1814
  %1820 = vmatpush.bf16.msra.mxu0 %v1813
  %1821 = vmatpush.bf16.msra.mxu0 %v1812
  %1822 = vmatpush.bf16.msra.mxu0 %v1811
  %1823 = vmatmul.bf16.gmra.mxu0 %v899
  %v1824 = vpop.f32.mrf.mxu0
  %v1825 = vadd.f32 %v871, %v1824
  %v1826 = vpop.f32.mrf.mxu0
  %v1827 = vadd.f32 %v876, %v1826
  %1828 = vmatmul.bf16.gmra.mxu0 %v902
  %v1829 = vpop.f32.mrf.mxu0
  %v1830 = vadd.f32 %v881, %v1829
  %v1831 = vpop.f32.mrf.mxu0
  %v1832 = vadd.f32 %v886, %v1831
  %1833 = vdwg.mxu0
  %v1834 = vtanh.pop %v1825
  %v1835 = vtanh.pop %v1827
  %v1836 = vsub.f32 %v1698, %v1830
  %v1837 = vsub.f32 %v1699, %v1832
  %v1838 = vsub.f32 0.0, %v1834
  %v1839 = vsub.f32 0.0, %v1835
  %v1840 = vmul.f32 %v1838, 1.442695
  %v1841 = vpow.pop %v1840
  %v1842 = vmul.f32 %v1839, 1.442695
  %v1843 = vpow.pop %v1842
  %v1844 = vmul.f32 %v1836, %v1841
  %v1845 = vmul.f32 %v1837, %v1843
  %s1846 = scalar_lea.vmem %s4, 32
  %v1847 = vld [vmem:[%s1846] sm:$0xff]
  %v1848 = vld [vmem:[%s1846 + $0x8] sm:$0xff]
  %v1849 = vld [vmem:[%s1846 + $0x10] sm:$0xff]
  %v1850 = vld [vmem:[%s1846 + $0x18] sm:$0xff]
  %s1851 = scalar_lea.vmem %s5, 32
  %v1852 = vld [vmem:[%s1851] sm:$0xff]
  %v1853 = vld [vmem:[%s1851 + $0x8] sm:$0xff]
  %v1854 = vld [vmem:[%s1851 + $0x10] sm:$0xff]
  %v1855 = vld [vmem:[%s1851 + $0x18] sm:$0xff]
  %1857 = vset.pattern.permute.xlu0 0
  %1858 = vperm.xlu0 %1857, %v1847
  %v1859 = vpop.permute.xlu0 %1858
  %1862 = vset.pattern.permute.xlu0 0
  %1863 = vperm.xlu0 %1862, %v1848
  %v1864 = vpop.permute.xlu0 %1863
  %v1866 = vmul.f32 %v1844, %v1859
  %v1867 = vmul.f32 %v1845, %v1864
  %1869 = vset.pattern.permute.xlu0 0
  %1870 = vperm.xlu0 %1869, %v1852
  %v1871 = vpop.permute.xlu0 %1870
  %1874 = vset.pattern.permute.xlu0 0
  %1875 = vperm.xlu0 %1874, %v1853
  %v1876 = vpop.permute.xlu0 %1875
  %v1878 = vsub.f32 %v1866, %v1871
  %v1879 = vsub.f32 %v1867, %v1876
  %1881 = vset.pattern.permute.xlu0 0
  %1882 = vperm.xlu0 %1881, %v1849
  %v1883 = vpop.permute.xlu0 %1882
  %1886 = vset.pattern.permute.xlu0 0
  %1887 = vperm.xlu0 %1886, %v1850
  %v1888 = vpop.permute.xlu0 %1887
  %v1890 = vmul.f32 %v1722, %v1883
  %v1891 = vmul.f32 %v1723, %v1888
  %1893 = vset.pattern.permute.xlu0 0
  %1894 = vperm.xlu0 %1893, %v1854
  %v1895 = vpop.permute.xlu0 %1894
  %1898 = vset.pattern.permute.xlu0 0
  %1899 = vperm.xlu0 %1898, %v1855
  %v1900 = vpop.permute.xlu0 %1899
  %v1902 = vsub.f32 %v1890, %v1895
  %v1903 = vsub.f32 %v1891, %v1900
  %v1904 = vld [vmem:[%s9] sm:$0xff]
  %v1905 = vld [vmem:[%s9 + $0x8] sm:$0xff]
  %v1906 = vld [vmem:[%s9 + $0x10] sm:$0xff]
  %v1907 = vld [vmem:[%s9 + $0x18] sm:$0xff]
  %v1908 = vld [vmem:[%s9 + $0x20] sm:$0xff]
  %v1909 = vld [vmem:[%s9 + $0x28] sm:$0xff]
  %v1910 = vld [vmem:[%s9 + $0x30] sm:$0xff]
  %v1911 = vld [vmem:[%s9 + $0x38] sm:$0xff]
  %v1912 = vpack.c.bf16 %v1879, %v1878
  %1914 = vset.pattern.permute.xlu0 0
  %1915 = vperm.xlu0 %1914, %v1904
  %v1916 = vpop.permute.xlu0 %1915
  %1919 = vset.pattern.permute.xlu0 0
  %1920 = vperm.xlu0 %1919, %v1905
  %v1921 = vpop.permute.xlu0 %1920
  %1924 = vset.pattern.permute.xlu0 0
  %1925 = vperm.xlu0 %1924, %v1906
  %v1926 = vpop.permute.xlu0 %1925
  %1929 = vset.pattern.permute.xlu0 0
  %1930 = vperm.xlu0 %1929, %v1907
  %v1931 = vpop.permute.xlu0 %1930
  %1934 = vset.pattern.permute.xlu0 0
  %1935 = vperm.xlu0 %1934, %v1908
  %v1936 = vpop.permute.xlu0 %1935
  %1939 = vset.pattern.permute.xlu0 0
  %1940 = vperm.xlu0 %1939, %v1909
  %v1941 = vpop.permute.xlu0 %1940
  %1944 = vset.pattern.permute.xlu0 0
  %1945 = vperm.xlu0 %1944, %v1910
  %v1946 = vpop.permute.xlu0 %1945
  %1949 = vset.pattern.permute.xlu0 0
  %1950 = vperm.xlu0 %1949, %v1911
  %v1951 = vpop.permute.xlu0 %1950
  %1953 = vmatpush.bf16.msra.mxu0 0
  %1954 = vmatpush.bf16.msra.mxu0 0
  %1955 = vmatpush.bf16.msra.mxu0 0
  %1956 = vmatpush.bf16.msra.mxu0 0
  %1957 = vmatpush.bf16.msra.mxu0 0
  %1958 = vmatpush.bf16.msra.mxu0 0
  %1959 = vmatpush.bf16.msra.mxu0 0
  %1960 = vmatpush.bf16.msra.mxu0 %v1912
  %1961 = vmatmul.bf16.gmra.mxu0 %v591
  %v1962 = vpop.f32.mrf.mxu0
  %v1963 = vadd.f32 %v1916, %v1962
  %v1964 = vpop.f32.mrf.mxu0
  %v1965 = vadd.f32 %v1921, %v1964
  %1966 = vmatmul.bf16.gmra.mxu0 %v594
  %v1967 = vpop.f32.mrf.mxu0
  %v1968 = vadd.f32 %v1926, %v1967
  %v1969 = vpop.f32.mrf.mxu0
  %v1970 = vadd.f32 %v1931, %v1969
  %1971 = vmatmul.bf16.gmra.mxu0 %v597
  %v1972 = vpop.f32.mrf.mxu0
  %v1973 = vadd.f32 %v1936, %v1972
  %v1974 = vpop.f32.mrf.mxu0
  %v1975 = vadd.f32 %v1941, %v1974
  %1976 = vmatmul.bf16.gmra.mxu0 %v600
  %v1977 = vpop.f32.mrf.mxu0
  %v1978 = vadd.f32 %v1946, %v1977
  %v1979 = vpop.f32.mrf.mxu0
  %v1980 = vadd.f32 %v1951, %v1979
  %1981 = vdwg.mxu0
  %v1982 = vmax.f32 %v1963, 0.0
  %v1983 = vmax.f32 %v1965, 0.0
  %v1984 = vmax.f32 %v1968, 0.0
  %v1985 = vmax.f32 %v1970, 0.0
  %v1986 = vmax.f32 %v1973, 0.0
  %v1987 = vmax.f32 %v1975, 0.0
  %v1988 = vmax.f32 %v1978, 0.0
  %v1989 = vmax.f32 %v1980, 0.0
  %v1990 = vpack.c.bf16 %v1983, %v1982
  %v1991 = vpack.c.bf16 %v1985, %v1984
  %v1992 = vpack.c.bf16 %v1987, %v1986
  %v1993 = vpack.c.bf16 %v1989, %v1988
  %1994 = vmatpush.bf16.msra.mxu0 0
  %1995 = vmatpush.bf16.msra.mxu0 0
  %1996 = vmatpush.bf16.msra.mxu0 0
  %1997 = vmatpush.bf16.msra.mxu0 0
  %1998 = vmatpush.bf16.msra.mxu0 %v1993
  %1999 = vmatpush.bf16.msra.mxu0 %v1992
  %2000 = vmatpush.bf16.msra.mxu0 %v1991
  %2001 = vmatpush.bf16.msra.mxu0 %v1990
  %2002 = vmatmul.bf16.gmra.mxu0 %v683
  %v2003 = vpop.f32.mrf.mxu0
  %v2004 = vadd.f32 %v654, %v2003
  %v2005 = vpop.f32.mrf.mxu0
  %v2006 = vadd.f32 %v659, %v2005
  %2007 = vmatmul.bf16.gmra.mxu0 %v686
  %v2008 = vpop.f32.mrf.mxu0
  %v2009 = vadd.f32 %v664, %v2008
  %v2010 = vpop.f32.mrf.mxu0
  %v2011 = vadd.f32 %v669, %v2010
  %2012 = vdwg.mxu0
  %v2013 = vtanh.pop %v2004
  %v2014 = vtanh.pop %v2006
  %v2015 = vsub.f32 %v1902, %v2009
  %v2016 = vsub.f32 %v1903, %v2011
  %v2017 = vsub.f32 0.0, %v2013
  %v2018 = vsub.f32 0.0, %v2014
  %v2019 = vmul.f32 %v2017, 1.442695
  %v2020 = vpow.pop %v2019
  %v2021 = vmul.f32 %v2018, 1.442695
  %v2022 = vpow.pop %v2021
  %v2023 = vmul.f32 %v2015, %v2020
  %v2024 = vmul.f32 %v2016, %v2022
  %v2025 = vld [vmem:[%s4] sm:$0xff]
  %v2026 = vld [vmem:[%s4 + $0x8] sm:$0xff]
  %v2027 = vld [vmem:[%s4 + $0x10] sm:$0xff]
  %v2028 = vld [vmem:[%s4 + $0x18] sm:$0xff]
  %v2029 = vld [vmem:[%s5] sm:$0xff]
  %v2030 = vld [vmem:[%s5 + $0x8] sm:$0xff]
  %v2031 = vld [vmem:[%s5 + $0x10] sm:$0xff]
  %v2032 = vld [vmem:[%s5 + $0x18] sm:$0xff]
  %2034 = vset.pattern.permute.xlu0 0
  %2035 = vperm.xlu0 %2034, %v2025
  %v2036 = vpop.permute.xlu0 %2035
  %2039 = vset.pattern.permute.xlu0 0
  %2040 = vperm.xlu0 %2039, %v2026
  %v2041 = vpop.permute.xlu0 %2040
  %v2043 = vmul.f32 %v1878, %v2036
  %v2044 = vmul.f32 %v1879, %v2041
  %2046 = vset.pattern.permute.xlu0 0
  %2047 = vperm.xlu0 %2046, %v2029
  %v2048 = vpop.permute.xlu0 %2047
  %2051 = vset.pattern.permute.xlu0 0
  %2052 = vperm.xlu0 %2051, %v2030
  %v2053 = vpop.permute.xlu0 %2052
  %v2055 = vsub.f32 %v2043, %v2048
  %v2056 = vsub.f32 %v2044, %v2053
  %2058 = vset.pattern.permute.xlu0 0
  %2059 = vperm.xlu0 %2058, %v2027
  %v2060 = vpop.permute.xlu0 %2059
  %2063 = vset.pattern.permute.xlu0 0
  %2064 = vperm.xlu0 %2063, %v2028
  %v2065 = vpop.permute.xlu0 %2064
  %v2067 = vmul.f32 %v2023, %v2060
  %v2068 = vmul.f32 %v2024, %v2065
  %2070 = vset.pattern.permute.xlu0 0
  %2071 = vperm.xlu0 %2070, %v2031
  %v2072 = vpop.permute.xlu0 %2071
  %2075 = vset.pattern.permute.xlu0 0
  %2076 = vperm.xlu0 %2075, %v2032
  %v2077 = vpop.permute.xlu0 %2076
  %v2079 = vsub.f32 %v2067, %v2072
  %v2080 = vsub.f32 %v2068, %v2077
  %2081 = vst [vmem:[%s12] sm:$0xff] %v2055
  %2082 = vst [vmem:[%s12 + $0x8] sm:$0xff] %v2056
  %2083 = vst [vmem:[%s12 + $0x10] sm:$0xff] %v2079
  %2084 = vst [vmem:[%s12 + $0x18] sm:$0xff] %v2080
  // Predicated region
  $region50: #{cinn_translate.1} parent=0 // pred_check
    _
  $region51: #{cinn_translate.1} parent=0 // pred_check_branch
    %2086 = sbr.rel (0) target = $region53
  $region52: #{cinn_translate.1} parent=0 // pred_region
    _
  $region53: #{cinn_translate.1} parent=0 // pred_fallthru
    _
  // Predicated region
  $region54: #{cinn_translate.1} parent=0 // pred_check
    _
  $region55: #{cinn_translate.1} parent=0 // pred_check_branch
    %2088 = sbr.rel (0) target = $region57
  $region56: #{cinn_translate.1} parent=0 // pred_region
    _
  $region57: #{cinn_translate.1} parent=0 // pred_fallthru
    _

</llo_original>
